<compile_context>
chip_gen: v7x
topology: tpu7x:2x2x1
jax: 0.10.0
libtpu: 0.0.40
codegen_flags: <defaults>
</compile_context>

<pallas_src>
import functools

import jax
import jax.numpy as jnp
from jax.experimental import pallas as pl
from jax.experimental.pallas import tpu as pltpu


def _round_up(x, m):
    return (x + m - 1) // m * m


def _convlstm_kernel(x_ref, h_ref, w_ref, c_ref, h_out_ref, c_out_ref,
                     stage_ref, patch_ref, *,
                     H, W, KH, KW, Cx, Cxp, Chid, Cinp, G, KPAD):
    """One group of G batch elements per grid step.

    x_ref  : (G, Cx, H*W)   f32   input tensor slab
    h_ref  : (G, Chid, H*W) f32   current hidden state
    w_ref  : (4*Chid, KH*KW*Cinp + KPAD) bf16  conv weights (+ bias column)
    c_ref  : (G, Chid, H*W) f32   current cell state
    h_out_ref, c_out_ref : (G, Chid, H*W) f32
    stage_ref : VMEM (G, Cinp, H*W + 2*margin) bf16  margin-padded activations
    patch_ref : VMEM (KH*KW*Cinp + KPAD, G*H*W) bf16 im2col patch matrix
    """
    HW = H * W
    ph, pw = KH // 2, KW // 2
    margin = ph * W + pw
    HWp = HW + 2 * margin
    Kconv = KH * KW * Cinp

    # Hoisted W-boundary masks (one per distinct non-zero column offset).
    w_idx = jax.lax.broadcasted_iota(jnp.int32, (1, HW), 1) % W
    wmask = {}
    for dw in range(-pw, pw + 1):
        if dw > 0:
            wmask[dw] = w_idx < W - dw
        elif dw < 0:
            wmask[dw] = w_idx >= -dw

    for g in range(G):
        # Stage this batch element ONCE in bf16, with a zero pixel margin
        # (handles the H boundary) and zero channel padding.  Re-zeroed every
        # step so megacore "parallel" splitting never sees stale scratch.
        stage_ref[g] = jnp.zeros((Cinp, HWp), dtype=stage_ref.dtype)
        stage_ref[g, 0:Cx, margin:margin + HW] = x_ref[g].astype(stage_ref.dtype)
        stage_ref[g, Cxp:Cxp + Chid, margin:margin + HW] = (
            h_ref[g].astype(stage_ref.dtype))

        # im2col: each kernel tap is a statically shifted lane window of the
        # margin-padded row-major image; only the W boundary needs a mask.
        for kh in range(KH):
            for kw in range(KW):
                dh, dw = kh - ph, kw - pw
                start = margin + dh * W + dw               # static, >= 0
                src = stage_ref[g, :, start:start + HW]    # (Cinp, HW) bf16
                if dw != 0:
                    src = jnp.where(wmask[dw], src, 0.0)
                t = kh * KW + kw
                patch_ref[t * Cinp:(t + 1) * Cinp, g * HW:(g + 1) * HW] = src

    # Bias rides the MXU: an all-ones patch row (rest of the pad block zero)
    # multiplies the bias column of the weight matrix.
    row = jax.lax.broadcasted_iota(jnp.int32, (KPAD, G * HW), 0)
    patch_ref[Kconv:Kconv + KPAD, :] = (row == 0).astype(patch_ref.dtype)

    # Single deep MXU matmul: (4*Chid, K) @ (K, G*HW), bf16 in, f32 acc.
    cc = jnp.dot(w_ref[...], patch_ref[...],
                 preferred_element_type=jnp.float32)        # (4*Chid, G*HW)

    # Gate order matches torch.split(combined_conv, hidden_dim, dim=1):
    # i, f, o, g.  Sublane slices at multiples of 8 -> no lane shuffles.
    gate_i = jax.nn.sigmoid(cc[0 * Chid:1 * Chid])
    gate_f = jax.nn.sigmoid(cc[1 * Chid:2 * Chid])
    gate_o = jax.nn.sigmoid(cc[2 * Chid:3 * Chid])
    gate_g = jnp.tanh(cc[3 * Chid:4 * Chid])

    for g in range(G):
        cols = slice(g * HW, (g + 1) * HW)
        c_next = gate_f[:, cols] * c_ref[g] + gate_i[:, cols] * gate_g[:, cols]
        h_next = gate_o[:, cols] * jnp.tanh(c_next)
        c_out_ref[g] = c_next.astype(c_out_ref.dtype)
        h_out_ref[g] = h_next.astype(h_out_ref.dtype)


def convlstm_cell_forward(x_nchw, h_nchw, c_nchw, weight_oihw, bias, *,
                          batch_per_step=None):
    """Pallas ConvLSTMCell forward.

    x_nchw : (B, Cin_x, H, W)   input tensor (NCHW, like PyTorch)
    h_nchw : (B, Chid, H, W)    current hidden state
    c_nchw : (B, Chid, H, W)    current cell state
    weight_oihw : (4*Chid, Cin_x+Chid, KH, KW)  nn.Conv2d weight layout
    bias   : (4*Chid,)
    batch_per_step : batch elements fused per grid step (None -> keep >= 2
                     grid steps so both v7x TensorCores are used; pass B on
                     single-TensorCore chips to fuse the whole batch).
    returns (h_next, c_next) each (B, Chid, H, W)
    """
    B, Cx, H, W = x_nchw.shape
    Chid = h_nchw.shape[1]
    C4, Cin, KH, KW = weight_oihw.shape
    assert C4 == 4 * Chid and Cin == Cx + Chid
    assert Chid % 8 == 0, "hidden_dim must be a multiple of 8 for free gate slices"
    HW = H * W
    assert HW % 128 == 0, "H*W must be a multiple of 128 (lane-dense layout)"

    if batch_per_step is None:
        batch_per_step = max(1, B // 2)
        while B % batch_per_step:
            batch_per_step -= 1
    G = batch_per_step
    assert 1 <= G <= B and B % G == 0

    ph, pw = KH // 2, KW // 2
    margin = ph * W + pw
    Cxp = _round_up(Cx, 16)          # bf16 sublane-tile aligned channel blocks
    Chp = _round_up(Chid, 16)
    Cinp = Cxp + Chp
    KPAD = 16                        # bias block (row 0 = ones, rest zero)
    Kconv = KH * KW * Cinp
    Ktot = Kconv + KPAD

    # NCHW -> (B, C, H*W): pure reshapes, no concat/pad/copy of activations.
    x = x_nchw.reshape(B, Cx, HW).astype(jnp.float32)
    h = h_nchw.reshape(B, Chid, HW).astype(jnp.float32)
    c = c_nchw.reshape(B, Chid, HW).astype(jnp.float32)

    # Conv weight OIHW -> (C4, KH*KW*Cinp + KPAD): tap-major columns, input
    # channels split/padded as [x | pad | h | pad] to match the patch rows,
    # bias folded in as the column that multiplies the all-ones patch row.
    w_t = jnp.transpose(weight_oihw, (0, 2, 3, 1))            # (C4, KH, KW, Cin)
    w_x = jnp.pad(w_t[..., :Cx], ((0, 0),) * 3 + ((0, Cxp - Cx),))
    w_h = jnp.pad(w_t[..., Cx:], ((0, 0),) * 3 + ((0, Chp - Chid),))
    w_conv = jnp.concatenate([w_x, w_h], axis=-1).reshape(C4, Kconv)
    w_bias = jnp.zeros((C4, KPAD), jnp.float32).at[:, 0].set(
        bias.astype(jnp.float32))
    w2 = jnp.concatenate([w_conv, w_bias], axis=1).astype(jnp.bfloat16)

    kernel = functools.partial(
        _convlstm_kernel, H=H, W=W, KH=KH, KW=KW, Cx=Cx, Cxp=Cxp,
        Chid=Chid, Cinp=Cinp, G=G, KPAD=KPAD)

    cost = pl.CostEstimate(
        flops=2 * B * HW * Ktot * C4,
        transcendentals=5 * B * HW * Chid,
        bytes_accessed=(x.size + h.size + c.size) * 4 + w2.size * 2
        + 2 * B * Chid * HW * 4)

    h_next, c_next = pl.pallas_call(
        kernel,
        out_shape=(
            jax.ShapeDtypeStruct((B, Chid, HW), jnp.float32),
            jax.ShapeDtypeStruct((B, Chid, HW), jnp.float32),
        ),
        grid=(B // G,),
        in_specs=[
            pl.BlockSpec((G, Cx, HW), lambda b: (b, 0, 0)),
            pl.BlockSpec((G, Chid, HW), lambda b: (b, 0, 0)),
            pl.BlockSpec((C4, Ktot), lambda b: (0, 0)),
            pl.BlockSpec((G, Chid, HW), lambda b: (b, 0, 0)),
        ],
        out_specs=(
            pl.BlockSpec((G, Chid, HW), lambda b: (b, 0, 0)),
            pl.BlockSpec((G, Chid, HW), lambda b: (b, 0, 0)),
        ),
        scratch_shapes=[
            pltpu.VMEM((G, Cinp, HW + 2 * margin), jnp.bfloat16),
            pltpu.VMEM((Ktot, G * HW), jnp.bfloat16),
        ],
        input_output_aliases={3: 1},   # c_next written in place over c
        compiler_params=pltpu.CompilerParams(
            dimension_semantics=("parallel",),
            vmem_limit_bytes=32 * 1024 * 1024),
        cost_estimate=cost,
    )(x, h, w2, c)

    # (B, Chid, H*W) -> NCHW by reshape only (no transpose).
    return h_next.reshape(B, Chid, H, W), c_next.reshape(B, Chid, H, W)


def _reference_forward(x_nchw, h_nchw, c_nchw, weight_oihw, bias):
    """Pure-JAX reference matching the PyTorch forward exactly (f32 conv)."""
    combined = jnp.concatenate([x_nchw, h_nchw], axis=1)      # (B, Cin, H, W)
    KH, KW = weight_oihw.shape[2], weight_oihw.shape[3]
    out = jax.lax.conv_general_dilated(
        combined, weight_oihw,
        window_strides=(1, 1),
        padding=((KH // 2, KH // 2), (KW // 2, KW // 2)),
        dimension_numbers=("NCHW", "OIHW", "NCHW"))
    out = out + bias.reshape(1, -1, 1, 1)
    cc_i, cc_f, cc_o, cc_g = jnp.split(out, 4, axis=1)
    i = jax.nn.sigmoid(cc_i)
    f = jax.nn.sigmoid(cc_f)
    o = jax.nn.sigmoid(cc_o)
    g = jnp.tanh(cc_g)
    c_next = f * c_nchw + i * g
    h_next = o * jnp.tanh(c_next)
    return h_next, c_next


if __name__ == "__main__":
    # Small shapes consistent with the module.
    B, Cin_x, Chid, H, W = 2, 4, 32, 16, 16
    KH, KW = 3, 3
    Cin = Cin_x + Chid
    C4 = 4 * Chid

    key = jax.random.PRNGKey(0)
    kx, kh, kc, kw_key, kb = jax.random.split(key, 5)

    x = jax.random.normal(kx, (B, Cin_x, H, W), dtype=jnp.float32)
    h_cur = jax.random.normal(kh, (B, Chid, H, W), dtype=jnp.float32)
    c_cur = jax.random.normal(kc, (B, Chid, H, W), dtype=jnp.float32)

    # Deterministic xavier_uniform init of the Conv2d weight; small bias so
    # the (folded) bias path is exercised.
    fan_in = Cin * KH * KW
    fan_out = C4 * KH * KW
    bound = (6.0 / (fan_in + fan_out)) ** 0.5
    weight = jax.random.uniform(
        kw_key, (C4, Cin, KH, KW), minval=-bound, maxval=bound,
        dtype=jnp.float32)
    bias = 0.1 * jax.random.normal(kb, (C4,), dtype=jnp.float32)

    h_exp, c_exp = _reference_forward(x, h_cur, c_cur, weight, bias)

    # Default: 2 "parallel" grid steps (one element per v7x TensorCore).
    h1, c1 = convlstm_cell_forward(x, h_cur, c_cur, weight, bias)
    # Fully batch-fused variant: one wide MXU matmul (best on 1-TC v5e/v6e).
    h2, c2 = convlstm_cell_forward(x, h_cur, c_cur, weight, bias,
                                   batch_per_step=B)
    jax.block_until_ready((h1, c1, h2, c2))

    # bf16 MXU matmul (f32 accumulation) vs f32 reference -> loosened tol.
    for hn, cn in ((h1, c1), (h2, c2)):
        assert jnp.allclose(hn, h_exp, atol=2e-2, rtol=2e-2)
        assert jnp.allclose(cn, c_exp, atol=2e-2, rtol=2e-2)

    print("KERNEL_OK")
</pallas_src>

<mosaic_0001>
module attributes {stable_mosaic.version = 11 : i64} {
  func.func @_convlstm_kernel(%arg0: i32, %arg1: memref<1x4x256xf32, #tpu.memory_space<vmem>>, %arg2: memref<1x32x256xf32, #tpu.memory_space<vmem>>, %arg3: memref<128x448xbf16, #tpu.memory_space<vmem>>, %arg4: memref<1x32x256xf32, #tpu.memory_space<vmem>>, %arg5: memref<1x32x256xf32, #tpu.memory_space<vmem>>, %arg6: memref<1x32x256xf32, #tpu.memory_space<vmem>>, %arg7: memref<1x48x290xbf16, #tpu.memory_space<vmem>>, %arg8: memref<448x256xbf16, #tpu.memory_space<vmem>>) attributes {dimension_semantics = [#tpu.dimension_semantics<parallel>], iteration_bounds = array<i64: 2>, scalar_prefetch = 0 : i64, scratch_operands = 2 : i64, tpu.core_type = #tpu.core_type<tc>, window_params = [{transform_indices = @transform_0, window_bounds = array<i64: 1, 4, 256>}, {transform_indices = @transform_1, window_bounds = array<i64: 1, 32, 256>}, {pipeline_mode = #tpu.pipeline_mode<synchronous>, transform_indices = @transform_2, window_bounds = array<i64: 128, 448>}, {transform_indices = @transform_3, window_bounds = array<i64: 1, 32, 256>}, {transform_indices = @transform_4, window_bounds = array<i64: 1, 32, 256>}, {transform_indices = @transform_5, window_bounds = array<i64: 1, 32, 256>}]} {
    %0 = tpu.iota {dimensions = array<i32: 1>} : vector<1x256xi32>
    %c16_i32 = arith.constant 16 : i32
    %c0_i32 = arith.constant 0 : i32
    %1 = arith.cmpi eq, %c16_i32, %c0_i32 : i32
    %c1_i32 = arith.constant 1 : i32
    %2 = arith.select %1, %c1_i32, %c16_i32 : i32
    %3 = vector.broadcast %2 : i32 to vector<1x256xi32>
    %4 = arith.remsi %0, %3 : vector<1x256xi32>
    %c0_i32_0 = arith.constant 0 : i32
    %5 = vector.broadcast %c0_i32_0 : i32 to vector<1x256xi32>
    %6 = arith.cmpi ne, %4, %5 : vector<1x256xi32>
    %c0_i32_1 = arith.constant 0 : i32
    %7 = vector.broadcast %c0_i32_1 : i32 to vector<1x256xi32>
    %8 = arith.cmpi slt, %4, %7 : vector<1x256xi32>
    %c0_i32_2 = arith.constant 0 : i32
    %9 = arith.cmpi slt, %2, %c0_i32_2 : i32
    %10 = vector.broadcast %9 : i1 to vector<1x256xi1>
    %11 = vector.broadcast %10 : vector<1x256xi1> to vector<1x256xi1>
    %12 = arith.xori %8, %11 : vector<1x256xi1>
    %13 = arith.andi %12, %6 : vector<1x256xi1>
    %14 = vector.broadcast %2 : i32 to vector<1x256xi32>
    %15 = arith.addi %4, %14 : vector<1x256xi32>
    %16 = arith.select %13, %15, %4 : vector<1x256xi1>, vector<1x256xi32>
    %c1_i32_3 = arith.constant 1 : i32
    %17 = vector.broadcast %c1_i32_3 : i32 to vector<1x256xi32>
    %18 = arith.cmpi sge, %16, %17 : vector<1x256xi32>
    %c15_i32 = arith.constant 15 : i32
    %19 = vector.broadcast %c15_i32 : i32 to vector<1x256xi32>
    %20 = arith.cmpi slt, %16, %19 : vector<1x256xi32>
    %cst = arith.constant 0.000000e+00 : bf16
    %21 = vector.broadcast %cst : bf16 to vector<48x290xbf16>
    %c0 = arith.constant 0 : index
    %c0_4 = arith.constant 0 : index
    %c0_5 = arith.constant 0 : index
    %22 = vector.load %arg7[%c0, %c0_4, %c0_5] : memref<1x48x290xbf16, #tpu.memory_space<vmem>>, vector<1x48x290xbf16>
    %23 = vector.shape_cast %22 : vector<1x48x290xbf16> to vector<48x290xbf16>
    %24 = vector.shape_cast %21 : vector<48x290xbf16> to vector<1x48x290xbf16>
    tpu.vector_store %arg7[%c0, %c0_4, %c0_5], %24 {strides = array<i32>} : memref<1x48x290xbf16, #tpu.memory_space<vmem>>, vector<1x48x290xbf16>,
    %c0_6 = arith.constant 0 : index
    %c0_7 = arith.constant 0 : index
    %c0_8 = arith.constant 0 : index
    %25 = vector.load %arg1[%c0_6, %c0_7, %c0_8] : memref<1x4x256xf32, #tpu.memory_space<vmem>>, vector<1x4x256xf32>
    %26 = vector.shape_cast %25 : vector<1x4x256xf32> to vector<4x256xf32>
    %27 = arith.truncf %26 : vector<4x256xf32> to vector<4x256xbf16>
    %c0_9 = arith.constant 0 : index
    %c0_10 = arith.constant 0 : index
    %c17 = arith.constant 17 : index
    %28 = vector.load %arg7[%c0_9, %c0_10, %c17] : memref<1x48x290xbf16, #tpu.memory_space<vmem>>, vector<1x4x256xbf16>
    %29 = vector.shape_cast %28 : vector<1x4x256xbf16> to vector<4x256xbf16>
    %30 = vector.shape_cast %27 : vector<4x256xbf16> to vector<1x4x256xbf16>
    tpu.vector_store %arg7[%c0_9, %c0_10, %c17], %30 {strides = array<i32>} : memref<1x48x290xbf16, #tpu.memory_space<vmem>>, vector<1x4x256xbf16>,
    %c0_11 = arith.constant 0 : index
    %c0_12 = arith.constant 0 : index
    %c0_13 = arith.constant 0 : index
    %31 = vector.load %arg2[%c0_11, %c0_12, %c0_13] : memref<1x32x256xf32, #tpu.memory_space<vmem>>, vector<1x32x256xf32>
    %32 = vector.shape_cast %31 : vector<1x32x256xf32> to vector<32x256xf32>
    %33 = arith.truncf %32 : vector<32x256xf32> to vector<32x256xbf16>
    %c0_14 = arith.constant 0 : index
    %c16 = arith.constant 16 : index
    %c17_15 = arith.constant 17 : index
    %34 = vector.load %arg7[%c0_14, %c16, %c17_15] : memref<1x48x290xbf16, #tpu.memory_space<vmem>>, vector<1x32x256xbf16>
    %35 = vector.shape_cast %34 : vector<1x32x256xbf16> to vector<32x256xbf16>
    %36 = vector.shape_cast %33 : vector<32x256xbf16> to vector<1x32x256xbf16>
    tpu.vector_store %arg7[%c0_14, %c16, %c17_15], %36 {strides = array<i32>} : memref<1x48x290xbf16, #tpu.memory_space<vmem>>, vector<1x32x256xbf16>,
    %c0_16 = arith.constant 0 : index
    %c0_17 = arith.constant 0 : index
    %c0_18 = arith.constant 0 : index
    %37 = vector.load %arg7[%c0_16, %c0_17, %c0_18] : memref<1x48x290xbf16, #tpu.memory_space<vmem>>, vector<1x48x256xbf16>
    %38 = vector.shape_cast %37 : vector<1x48x256xbf16> to vector<48x256xbf16>
    %cst_19 = arith.constant 0.000000e+00 : f32
    %39 = arith.truncf %cst_19 : f32 to bf16
    %40 = vector.shape_cast %18 : vector<1x256xi1> to vector<1x256xi1>
    %41 = vector.broadcast %40 : vector<1x256xi1> to vector<48x256xi1>
    %42 = vector.broadcast %39 : bf16 to vector<48x256xbf16>
    %43 = arith.select %41, %38, %42 : vector<48x256xi1>, vector<48x256xbf16>
    %c0_20 = arith.constant 0 : index
    %c0_21 = arith.constant 0 : index
    %44 = vector.load %arg8[%c0_20, %c0_21] : memref<448x256xbf16, #tpu.memory_space<vmem>>, vector<48x256xbf16>
    tpu.vector_store %arg8[%c0_20, %c0_21], %43 {strides = array<i32>} : memref<448x256xbf16, #tpu.memory_space<vmem>>, vector<48x256xbf16>,
    %c0_22 = arith.constant 0 : index
    %c0_23 = arith.constant 0 : index
    %c1 = arith.constant 1 : index
    %45 = vector.load %arg7[%c0_22, %c0_23, %c1] : memref<1x48x290xbf16, #tpu.memory_space<vmem>>, vector<1x48x256xbf16>
    %46 = vector.shape_cast %45 : vector<1x48x256xbf16> to vector<48x256xbf16>
    %c48 = arith.constant 48 : index
    %c0_24 = arith.constant 0 : index
    %47 = vector.load %arg8[%c48, %c0_24] : memref<448x256xbf16, #tpu.memory_space<vmem>>, vector<48x256xbf16>
    tpu.vector_store %arg8[%c48, %c0_24], %46 {strides = array<i32>} : memref<448x256xbf16, #tpu.memory_space<vmem>>, vector<48x256xbf16>,
    %c0_25 = arith.constant 0 : index
    %c0_26 = arith.constant 0 : index
    %c2 = arith.constant 2 : index
    %48 = vector.load %arg7[%c0_25, %c0_26, %c2] : memref<1x48x290xbf16, #tpu.memory_space<vmem>>, vector<1x48x256xbf16>
    %49 = vector.shape_cast %48 : vector<1x48x256xbf16> to vector<48x256xbf16>
    %cst_27 = arith.constant 0.000000e+00 : f32
    %50 = arith.truncf %cst_27 : f32 to bf16
    %51 = vector.shape_cast %20 : vector<1x256xi1> to vector<1x256xi1>
    %52 = vector.broadcast %51 : vector<1x256xi1> to vector<48x256xi1>
    %53 = vector.broadcast %50 : bf16 to vector<48x256xbf16>
    %54 = arith.select %52, %49, %53 : vector<48x256xi1>, vector<48x256xbf16>
    %c96 = arith.constant 96 : index
    %c0_28 = arith.constant 0 : index
    %55 = vector.load %arg8[%c96, %c0_28] : memref<448x256xbf16, #tpu.memory_space<vmem>>, vector<48x256xbf16>
    tpu.vector_store %arg8[%c96, %c0_28], %54 {strides = array<i32>} : memref<448x256xbf16, #tpu.memory_space<vmem>>, vector<48x256xbf16>,
    %c0_29 = arith.constant 0 : index
    %c0_30 = arith.constant 0 : index
    %c16_31 = arith.constant 16 : index
    %56 = vector.load %arg7[%c0_29, %c0_30, %c16_31] : memref<1x48x290xbf16, #tpu.memory_space<vmem>>, vector<1x48x256xbf16>
    %57 = vector.shape_cast %56 : vector<1x48x256xbf16> to vector<48x256xbf16>
    %cst_32 = arith.constant 0.000000e+00 : f32
    %58 = arith.truncf %cst_32 : f32 to bf16
    %59 = vector.shape_cast %18 : vector<1x256xi1> to vector<1x256xi1>
    %60 = vector.broadcast %59 : vector<1x256xi1> to vector<48x256xi1>
    %61 = vector.broadcast %58 : bf16 to vector<48x256xbf16>
    %62 = arith.select %60, %57, %61 : vector<48x256xi1>, vector<48x256xbf16>
    %c144 = arith.constant 144 : index
    %c0_33 = arith.constant 0 : index
    %63 = vector.load %arg8[%c144, %c0_33] : memref<448x256xbf16, #tpu.memory_space<vmem>>, vector<48x256xbf16>
    tpu.vector_store %arg8[%c144, %c0_33], %62 {strides = array<i32>} : memref<448x256xbf16, #tpu.memory_space<vmem>>, vector<48x256xbf16>,
    %c0_34 = arith.constant 0 : index
    %c0_35 = arith.constant 0 : index
    %c17_36 = arith.constant 17 : index
    %64 = vector.load %arg7[%c0_34, %c0_35, %c17_36] : memref<1x48x290xbf16, #tpu.memory_space<vmem>>, vector<1x48x256xbf16>
    %65 = vector.shape_cast %64 : vector<1x48x256xbf16> to vector<48x256xbf16>
    %c192 = arith.constant 192 : index
    %c0_37 = arith.constant 0 : index
    %66 = vector.load %arg8[%c192, %c0_37] : memref<448x256xbf16, #tpu.memory_space<vmem>>, vector<48x256xbf16>
    tpu.vector_store %arg8[%c192, %c0_37], %65 {strides = array<i32>} : memref<448x256xbf16, #tpu.memory_space<vmem>>, vector<48x256xbf16>,
    %c0_38 = arith.constant 0 : index
    %c0_39 = arith.constant 0 : index
    %c18 = arith.constant 18 : index
    %67 = vector.load %arg7[%c0_38, %c0_39, %c18] : memref<1x48x290xbf16, #tpu.memory_space<vmem>>, vector<1x48x256xbf16>
    %68 = vector.shape_cast %67 : vector<1x48x256xbf16> to vector<48x256xbf16>
    %cst_40 = arith.constant 0.000000e+00 : f32
    %69 = arith.truncf %cst_40 : f32 to bf16
    %70 = vector.shape_cast %20 : vector<1x256xi1> to vector<1x256xi1>
    %71 = vector.broadcast %70 : vector<1x256xi1> to vector<48x256xi1>
    %72 = vector.broadcast %69 : bf16 to vector<48x256xbf16>
    %73 = arith.select %71, %68, %72 : vector<48x256xi1>, vector<48x256xbf16>
    %c240 = arith.constant 240 : index
    %c0_41 = arith.constant 0 : index
    %74 = vector.load %arg8[%c240, %c0_41] : memref<448x256xbf16, #tpu.memory_space<vmem>>, vector<48x256xbf16>
    tpu.vector_store %arg8[%c240, %c0_41], %73 {strides = array<i32>} : memref<448x256xbf16, #tpu.memory_space<vmem>>, vector<48x256xbf16>,
    %c0_42 = arith.constant 0 : index
    %c0_43 = arith.constant 0 : index
    %c32 = arith.constant 32 : index
    %75 = vector.load %arg7[%c0_42, %c0_43, %c32] : memref<1x48x290xbf16, #tpu.memory_space<vmem>>, vector<1x48x256xbf16>
    %76 = vector.shape_cast %75 : vector<1x48x256xbf16> to vector<48x256xbf16>
    %cst_44 = arith.constant 0.000000e+00 : f32
    %77 = arith.truncf %cst_44 : f32 to bf16
    %78 = vector.shape_cast %18 : vector<1x256xi1> to vector<1x256xi1>
    %79 = vector.broadcast %78 : vector<1x256xi1> to vector<48x256xi1>
    %80 = vector.broadcast %77 : bf16 to vector<48x256xbf16>
    %81 = arith.select %79, %76, %80 : vector<48x256xi1>, vector<48x256xbf16>
    %c288 = arith.constant 288 : index
    %c0_45 = arith.constant 0 : index
    %82 = vector.load %arg8[%c288, %c0_45] : memref<448x256xbf16, #tpu.memory_space<vmem>>, vector<48x256xbf16>
    tpu.vector_store %arg8[%c288, %c0_45], %81 {strides = array<i32>} : memref<448x256xbf16, #tpu.memory_space<vmem>>, vector<48x256xbf16>,
    %c0_46 = arith.constant 0 : index
    %c0_47 = arith.constant 0 : index
    %c33 = arith.constant 33 : index
    %83 = vector.load %arg7[%c0_46, %c0_47, %c33] : memref<1x48x290xbf16, #tpu.memory_space<vmem>>, vector<1x48x256xbf16>
    %84 = vector.shape_cast %83 : vector<1x48x256xbf16> to vector<48x256xbf16>
    %c336 = arith.constant 336 : index
    %c0_48 = arith.constant 0 : index
    %85 = vector.load %arg8[%c336, %c0_48] : memref<448x256xbf16, #tpu.memory_space<vmem>>, vector<48x256xbf16>
    tpu.vector_store %arg8[%c336, %c0_48], %84 {strides = array<i32>} : memref<448x256xbf16, #tpu.memory_space<vmem>>, vector<48x256xbf16>,
    %c0_49 = arith.constant 0 : index
    %c0_50 = arith.constant 0 : index
    %c34 = arith.constant 34 : index
    %86 = vector.load %arg7[%c0_49, %c0_50, %c34] : memref<1x48x290xbf16, #tpu.memory_space<vmem>>, vector<1x48x256xbf16>
    %87 = vector.shape_cast %86 : vector<1x48x256xbf16> to vector<48x256xbf16>
    %cst_51 = arith.constant 0.000000e+00 : f32
    %88 = arith.truncf %cst_51 : f32 to bf16
    %89 = vector.shape_cast %20 : vector<1x256xi1> to vector<1x256xi1>
    %90 = vector.broadcast %89 : vector<1x256xi1> to vector<48x256xi1>
    %91 = vector.broadcast %88 : bf16 to vector<48x256xbf16>
    %92 = arith.select %90, %87, %91 : vector<48x256xi1>, vector<48x256xbf16>
    %c384 = arith.constant 384 : index
    %c0_52 = arith.constant 0 : index
    %93 = vector.load %arg8[%c384, %c0_52] : memref<448x256xbf16, #tpu.memory_space<vmem>>, vector<48x256xbf16>
    tpu.vector_store %arg8[%c384, %c0_52], %92 {strides = array<i32>} : memref<448x256xbf16, #tpu.memory_space<vmem>>, vector<48x256xbf16>,
    %94 = tpu.iota {dimensions = array<i32: 0>} : vector<16x256xi32>
    %c0_i32_53 = arith.constant 0 : i32
    %95 = vector.broadcast %c0_i32_53 : i32 to vector<16x256xi32>
    %96 = arith.cmpi eq, %94, %95 : vector<16x256xi32>
    %97 = arith.extui %96 : vector<16x256xi1> to vector<16x256xi32>
    %98 = arith.sitofp %97 : vector<16x256xi32> to vector<16x256xf32>
    %99 = arith.truncf %98 : vector<16x256xf32> to vector<16x256xbf16>
    %c432 = arith.constant 432 : index
    %c0_54 = arith.constant 0 : index
    %100 = vector.load %arg8[%c432, %c0_54] : memref<448x256xbf16, #tpu.memory_space<vmem>>, vector<16x256xbf16>
    tpu.vector_store %arg8[%c432, %c0_54], %99 {strides = array<i32>} : memref<448x256xbf16, #tpu.memory_space<vmem>>, vector<16x256xbf16>,
    %c0_55 = arith.constant 0 : index
    %c0_56 = arith.constant 0 : index
    %101 = vector.load %arg3[%c0_55, %c0_56] : memref<128x448xbf16, #tpu.memory_space<vmem>>, vector<128x448xbf16>
    %c0_57 = arith.constant 0 : index
    %c0_58 = arith.constant 0 : index
    %102 = vector.load %arg8[%c0_57, %c0_58] : memref<448x256xbf16, #tpu.memory_space<vmem>>, vector<448x256xbf16>
    %cst_59 = arith.constant dense<0.000000e+00> : vector<128x256xf32>
    %103 = tpu.matmul %101, %102, %cst_59 {dimension_numbers = #tpu.dot_dimension_numbers<[1], [0], [0], [1], [0, 0, 1, 1], [], []>} : vector<128x448xbf16>, vector<448x256xbf16>, vector<128x256xf32> -> vector<128x256xf32>
    %104 = vector.extract_strided_slice %103 {offsets = [0, 0], sizes = [32, 256], strides = [1, 1]} : vector<128x256xf32> to vector<32x256xf32>
    %105 = arith.negf %104 : vector<32x256xf32>
    %106 = math.exp %105 : vector<32x256xf32>
    %cst_60 = arith.constant 1.000000e+00 : f32
    %107 = vector.broadcast %cst_60 : f32 to vector<32x256xf32>
    %108 = arith.addf %107, %106 : vector<32x256xf32>
    %109 = arith.divf %107, %108 : vector<32x256xf32>
    %110 = vector.extract_strided_slice %103 {offsets = [32, 0], sizes = [32, 256], strides = [1, 1]} : vector<128x256xf32> to vector<32x256xf32>
    %111 = arith.negf %110 : vector<32x256xf32>
    %112 = math.exp %111 : vector<32x256xf32>
    %cst_61 = arith.constant 1.000000e+00 : f32
    %113 = vector.broadcast %cst_61 : f32 to vector<32x256xf32>
    %114 = arith.addf %113, %112 : vector<32x256xf32>
    %115 = arith.divf %113, %114 : vector<32x256xf32>
    %116 = vector.extract_strided_slice %103 {offsets = [64, 0], sizes = [32, 256], strides = [1, 1]} : vector<128x256xf32> to vector<32x256xf32>
    %117 = arith.negf %116 : vector<32x256xf32>
    %118 = math.exp %117 : vector<32x256xf32>
    %cst_62 = arith.constant 1.000000e+00 : f32
    %119 = vector.broadcast %cst_62 : f32 to vector<32x256xf32>
    %120 = arith.addf %119, %118 : vector<32x256xf32>
    %121 = arith.divf %119, %120 : vector<32x256xf32>
    %122 = vector.extract_strided_slice %103 {offsets = [96, 0], sizes = [32, 256], strides = [1, 1]} : vector<128x256xf32> to vector<32x256xf32>
    %123 = math.tanh %122 : vector<32x256xf32>
    %c0_63 = arith.constant 0 : index
    %c0_64 = arith.constant 0 : index
    %c0_65 = arith.constant 0 : index
    %124 = vector.load %arg4[%c0_63, %c0_64, %c0_65] : memref<1x32x256xf32, #tpu.memory_space<vmem>>, vector<1x32x256xf32>
    %125 = vector.shape_cast %124 : vector<1x32x256xf32> to vector<32x256xf32>
    %126 = arith.mulf %115, %125 : vector<32x256xf32>
    %127 = arith.mulf %109, %123 : vector<32x256xf32>
    %128 = arith.addf %126, %127 : vector<32x256xf32>
    %129 = math.tanh %128 : vector<32x256xf32>
    %130 = arith.mulf %121, %129 : vector<32x256xf32>
    %c0_66 = arith.constant 0 : index
    %c0_67 = arith.constant 0 : index
    %c0_68 = arith.constant 0 : index
    %131 = vector.load %arg6[%c0_66, %c0_67, %c0_68] : memref<1x32x256xf32, #tpu.memory_space<vmem>>, vector<1x32x256xf32>
    %132 = vector.shape_cast %131 : vector<1x32x256xf32> to vector<32x256xf32>
    %133 = vector.shape_cast %128 : vector<32x256xf32> to vector<1x32x256xf32>
    tpu.vector_store %arg6[%c0_66, %c0_67, %c0_68], %133 {strides = array<i32>} : memref<1x32x256xf32, #tpu.memory_space<vmem>>, vector<1x32x256xf32>,
    %c0_69 = arith.constant 0 : index
    %c0_70 = arith.constant 0 : index
    %c0_71 = arith.constant 0 : index
    %134 = vector.load %arg5[%c0_69, %c0_70, %c0_71] : memref<1x32x256xf32, #tpu.memory_space<vmem>>, vector<1x32x256xf32>
    %135 = vector.shape_cast %134 : vector<1x32x256xf32> to vector<32x256xf32>
    %136 = vector.shape_cast %130 : vector<32x256xf32> to vector<1x32x256xf32>
    tpu.vector_store %arg5[%c0_69, %c0_70, %c0_71], %136 {strides = array<i32>} : memref<1x32x256xf32, #tpu.memory_space<vmem>>, vector<1x32x256xf32>,
    return
  }
  func.func @transform_0(%arg0: i32) -> (i32, i32, i32) {
    %c0_i32 = arith.constant 0 : i32
    %c0_i32_0 = arith.constant 0 : i32
    %c0_i32_1 = arith.constant 0 : i32
    return %arg0, %c0_i32, %c0_i32_0 : i32, i32, i32
  }
  func.func @transform_1(%arg0: i32) -> (i32, i32, i32) {
    %c0_i32 = arith.constant 0 : i32
    %c0_i32_0 = arith.constant 0 : i32
    %c0_i32_1 = arith.constant 0 : i32
    return %arg0, %c0_i32, %c0_i32_0 : i32, i32, i32
  }
  func.func @transform_2(%arg0: i32) -> (i32, i32) {
    %c0_i32 = arith.constant 0 : i32
    %c0_i32_0 = arith.constant 0 : i32
    %c0_i32_1 = arith.constant 0 : i32
    return %c0_i32, %c0_i32_0 : i32, i32
  }
  func.func @transform_3(%arg0: i32) -> (i32, i32, i32) {
    %c0_i32 = arith.constant 0 : i32
    %c0_i32_0 = arith.constant 0 : i32
    %c0_i32_1 = arith.constant 0 : i32
    return %arg0, %c0_i32, %c0_i32_0 : i32, i32, i32
  }
  func.func @transform_4(%arg0: i32) -> (i32, i32, i32) {
    %c0_i32 = arith.constant 0 : i32
    %c0_i32_0 = arith.constant 0 : i32
    %c0_i32_1 = arith.constant 0 : i32
    return %arg0, %c0_i32, %c0_i32_0 : i32, i32, i32
  }
  func.func @transform_5(%arg0: i32) -> (i32, i32, i32) {
    %c0_i32 = arith.constant 0 : i32
    %c0_i32_0 = arith.constant 0 : i32
    %c0_i32_1 = arith.constant 0 : i32
    return %arg0, %c0_i32, %c0_i32_0 : i32, i32, i32
  }
}

</mosaic_0001>

<llo_original>
// kernel: tpu_custom_call.1
$region0: #{tpu_custom_call.1}
  #allocation0 [shape = 'u32[]', space=smem, size = 0x4, offset = 0x4, fixed_abs, tag = 'smem constant byte address 0x4 - core index']
  #allocation1 [shape = 'u32[144,128]{1,0:T(1,128)}', space=vmem, size = 0x12000, scoped, tag = 'internal scratch']
  #allocation2 [shape = 'bf16[1,48,290]{2,1,0:T(16,128)(2,1)}', space=vmem, size = 0x9000, scoped, tag = 'scratch operand']
  #allocation3 [shape = 'bf16[448,256]{1,0:T(16,128)(2,1)}', space=vmem, size = 0x38000, scoped, tag = 'scratch operand']
  %s0 = inlined_call_operand.vmem [shape: f32[2,4,256], index: 0, kind: input, shape index: {}]
  %s1 = inlined_call_operand.vmem [shape: f32[2,32,256], index: 1, kind: input, shape index: {}]
  %s2 = inlined_call_operand.vmem [shape: bf16[128,448], index: 2, kind: input, shape index: {}]
  %s3 = inlined_call_operand.hbm [shape: f32[2,32,256], index: 3, kind: input, shape index: {}, may-alias: {3,5}]
  %s4 = inlined_call_operand.hbm [shape: f32[2,32,256], index: 4, kind: output, shape index: {0}]
  %s5 = inlined_call_operand.hbm [shape: f32[2,32,256], index: 5, kind: output, shape index: {1}, may-alias: {3,5}]
  %6 = xla_tuple %s4, %s5
  %s7 = sld [smem:[#allocation0]]
  $region61: #{tpu_custom_call.1} parent=0
    _
  %s9 = ssub.s32 1, %s7
  %s10 = scalar_select 0, %s9, %s7
  $region1: #{tpu_custom_call.1} parent=0
    #allocation4 [shape = 'u8[65536]{0}', space=vmem, size = 0x10000, scoped, tag = 'input window, operand 3']
    #allocation5 [shape = 's32[2]{0}', space=sflag, size = 0x8, scoped, tag = 'scoped memory for tpu_custom_call.1']
    #allocation6 [shape = 's32[2]{0}', space=sflag, size = 0x8, scoped, tag = 'scoped memory for tpu_custom_call.1']
    #allocation7 [shape = 'u8[65536]{0}', space=vmem, size = 0x10000, scoped, tag = 'output window, operand 0']
    #allocation8 [shape = 'u8[65536]{0}', space=vmem, size = 0x10000, scoped, tag = 'output window, operand 1']
    #allocation9 [shape = 's32[2]{0}', space=sflag, size = 0x8, scoped, tag = 'scoped memory for tpu_custom_call.1']
    %11 = vsyncpa [#allocation5], 0
    %s12 = scalar_lea.sflag [#allocation5], 1
    %13 = vsyncpa %s12, 0
    %14 = vsyncpa [#allocation6], 0
    %s15 = scalar_lea.sflag [#allocation6], 1
    %16 = vsyncpa %s15, 0
    %17 = vsyncpa [#allocation9], 0
    %s18 = scalar_lea.sflag [#allocation9], 1
    %19 = vsyncpa %s18, 0
    loop: start=0, step=1, limit=4
    $region2: #{tpu_custom_call.1} parent=1 // loop_pre_header
      _
    $region3: #{tpu_custom_call.1} parent=1 // loop_header
      %s21 = sphi 0, %s25
      %p22 = scmp.ge.s32.totalorder %s21, 4
      %s31 = sphi 0, %s33
      %s34 = sphi 0, %s31
      %s35 = sphi 0, %s34
      %s51 = sphi 0, %s35
      %s57 = sphi 0, %s59
      %s60 = sphi 0, %s57
      %s61 = sphi 0, %s60
      %s77 = sphi 0, %s61
      %s81 = sphi 0, %s81
      %s83 = sphi 0, %s81
      %s84 = sphi 0, %s83
      %s98 = sphi 0, %s84
      %s104 = sphi 0, %s106
      %s107 = sphi 0, %s104
      %s108 = sphi 0, %s107
      %s124 = sphi 0, %s108
      %s130 = sphi 0, %s132
      %s133 = sphi 0, %s130
      %s134 = sphi 0, %s133
      %s150 = sphi 0, %s134
      %s156 = sphi 0, %s158
      %s159 = sphi 0, %s156
      %s160 = sphi 0, %s159
      %s176 = sphi 0, %s160
    $region4: #{tpu_custom_call.1} parent=1 // loop_header_branch
      %24 = sbr.rel (%p22) target = $region8
    $region5: #{tpu_custom_call.1} parent=1 // loop_body
      %s26 = ssub.s32 %s21, 1
      %s27 = ssub.s32 %s21, 2
      %s28 = sadd.s32 %s21, 1
      %s29 = ssub.s32 %s21, %s28
      %p30 = scmp.eq.s32.totalorder %s29, 0
      %s32 = sadd.s32 %s31, 1
      %s33 = scalar_select %p30, %s31, %s32
      %p36 = pneg %p30
      %p37 = scmp.eq.s32.totalorder %s21, 1
      %p38 = por %p36, %p37
      %p39 = scmp.ne.s32.totalorder %s31, %s34
      %p40 = scmp.eq.s32.totalorder %s21, 0
      %p41 = por %p39, %p40
      %p42 = scmp.ne.s32.totalorder %s31, %s34
      %p43 = scmp.eq.s32.totalorder %s26, 1
      %p44 = por %p42, %p43
      %p45 = scmp.ne.s32.totalorder %s34, %s35
      %p46 = scmp.eq.s32.totalorder %s26, 0
      %p47 = por %p45, %p46
      %p48 = scmp.ne.s32.totalorder %s34, %s35
      %p49 = scmp.eq.s32.totalorder %s27, 1
      %p50 = por %p48, %p49
      %p52 = scmp.ne.s32.totalorder %s35, %s51
      %p53 = scmp.eq.s32.totalorder %s27, 0
      %p54 = por %p52, %p53
      %s55 = ssub.s32 %s21, %s28
      %p56 = scmp.eq.s32.totalorder %s55, 0
      %s58 = sadd.s32 %s57, 1
      %s59 = scalar_select %p56, %s57, %s58
      %p62 = pneg %p56
      %p63 = scmp.eq.s32.totalorder %s21, 1
      %p64 = por %p62, %p63
      %p65 = scmp.ne.s32.totalorder %s57, %s60
      %p66 = scmp.eq.s32.totalorder %s21, 0
      %p67 = por %p65, %p66
      %p68 = scmp.ne.s32.totalorder %s57, %s60
      %p69 = scmp.eq.s32.totalorder %s26, 1
      %p70 = por %p68, %p69
      %p71 = scmp.ne.s32.totalorder %s60, %s61
      %p72 = scmp.eq.s32.totalorder %s26, 0
      %p73 = por %p71, %p72
      %p74 = scmp.ne.s32.totalorder %s60, %s61
      %p75 = scmp.eq.s32.totalorder %s27, 1
      %p76 = por %p74, %p75
      %p78 = scmp.ne.s32.totalorder %s61, %s77
      %p79 = scmp.eq.s32.totalorder %s27, 0
      %p80 = por %p78, %p79
      %s82 = sadd.s32 %s81, 1
      %p85 = scmp.eq.s32.totalorder %s21, 1
      %p86 = scmp.ne.s32.totalorder %s81, %s83
      %p87 = scmp.eq.s32.totalorder %s21, 0
      %p88 = por %p86, %p87
      %p89 = scmp.ne.s32.totalorder %s81, %s83
      %p90 = scmp.eq.s32.totalorder %s26, 1
      %p91 = por %p89, %p90
      %p92 = scmp.ne.s32.totalorder %s83, %s84
      %p93 = scmp.eq.s32.totalorder %s26, 0
      %p94 = por %p92, %p93
      %p95 = scmp.ne.s32.totalorder %s83, %s84
      %p96 = scmp.eq.s32.totalorder %s27, 1
      %p97 = por %p95, %p96
      %p99 = scmp.ne.s32.totalorder %s84, %s98
      %p100 = scmp.eq.s32.totalorder %s27, 0
      %p101 = por %p99, %p100
      %s102 = ssub.s32 %s21, %s28
      %p103 = scmp.eq.s32.totalorder %s102, 0
      %s105 = sadd.s32 %s104, 1
      %s106 = scalar_select %p103, %s104, %s105
      %p109 = pneg %p103
      %p110 = scmp.eq.s32.totalorder %s21, 1
      %p111 = por %p109, %p110
      %p112 = scmp.ne.s32.totalorder %s104, %s107
      %p113 = scmp.eq.s32.totalorder %s21, 0
      %p114 = por %p112, %p113
      %p115 = scmp.ne.s32.totalorder %s104, %s107
      %p116 = scmp.eq.s32.totalorder %s26, 1
      %p117 = por %p115, %p116
      %p118 = scmp.ne.s32.totalorder %s107, %s108
      %p119 = scmp.eq.s32.totalorder %s26, 0
      %p120 = por %p118, %p119
      %p121 = scmp.ne.s32.totalorder %s107, %s108
      %p122 = scmp.eq.s32.totalorder %s27, 1
      %p123 = por %p121, %p122
      %p125 = scmp.ne.s32.totalorder %s108, %s124
      %p126 = scmp.eq.s32.totalorder %s27, 0
      %p127 = por %p125, %p126
      %s128 = ssub.s32 %s21, %s28
      %p129 = scmp.eq.s32.totalorder %s128, 0
      %s131 = sadd.s32 %s130, 1
      %s132 = scalar_select %p129, %s130, %s131
      %p135 = pneg %p129
      %p136 = scmp.eq.s32.totalorder %s21, 1
      %p137 = por %p135, %p136
      %p138 = scmp.ne.s32.totalorder %s130, %s133
      %p139 = scmp.eq.s32.totalorder %s21, 0
      %p140 = por %p138, %p139
      %p141 = scmp.ne.s32.totalorder %s130, %s133
      %p142 = scmp.eq.s32.totalorder %s26, 1
      %p143 = por %p141, %p142
      %p144 = scmp.ne.s32.totalorder %s133, %s134
      %p145 = scmp.eq.s32.totalorder %s26, 0
      %p146 = por %p144, %p145
      %p147 = scmp.ne.s32.totalorder %s133, %s134
      %p148 = scmp.eq.s32.totalorder %s27, 1
      %p149 = por %p147, %p148
      %p151 = scmp.ne.s32.totalorder %s134, %s150
      %p152 = scmp.eq.s32.totalorder %s27, 0
      %p153 = por %p151, %p152
      %s154 = ssub.s32 %s21, %s28
      %p155 = scmp.eq.s32.totalorder %s154, 0
      %s157 = sadd.s32 %s156, 1
      %s158 = scalar_select %p155, %s156, %s157
      %p161 = pneg %p155
      %p162 = scmp.eq.s32.totalorder %s21, 1
      %p163 = por %p161, %p162
      %p164 = scmp.ne.s32.totalorder %s156, %s159
      %p165 = scmp.eq.s32.totalorder %s21, 0
      %p166 = por %p164, %p165
      %p167 = scmp.ne.s32.totalorder %s156, %s159
      %p168 = scmp.eq.s32.totalorder %s26, 1
      %p169 = por %p167, %p168
      %p170 = scmp.ne.s32.totalorder %s159, %s160
      %p171 = scmp.eq.s32.totalorder %s26, 0
      %p172 = por %p170, %p171
      %p173 = scmp.ne.s32.totalorder %s159, %s160
      %p174 = scmp.eq.s32.totalorder %s27, 1
      %p175 = por %p173, %p174
      %p177 = scmp.ne.s32.totalorder %s160, %s176
      %p178 = scmp.eq.s32.totalorder %s27, 0
      %p179 = por %p177, %p178
      %p180 = scmp.le.s32.totalorder 1, %s21
      %p181 = scmp.lt.s32.totalorder %s21, 3
      %p182 = pnand %p180, %p181
      %p183 = pneg %p182
      // Predicated region
      $region9: #{tpu_custom_call.1} parent=5 // pred_check
        _
      $region10: #{tpu_custom_call.1} parent=5 // pred_check_branch
        %185 = sbr.rel (%p182) target = $region12
      $region11: #{tpu_custom_call.1} parent=5 // pred_region
        %s186 = ssub.s32 %s21, 1
        // Predicated region
        $region13: #{tpu_custom_call.1} parent=11 // pred_check
          %p187 = pneg %p94
        $region14: #{tpu_custom_call.1} parent=11 // pred_check_branch
          %189 = sbr.rel (%p187) target = $region16
        $region15: #{tpu_custom_call.1} parent=11 // pred_region
          _
        $region16: #{tpu_custom_call.1} parent=11 // pred_fallthru
          _
      $region12: #{tpu_custom_call.1} parent=5 // pred_fallthru
        _
      %p190 = scmp.lt.s32.totalorder %s21, 2
      // Predicated region
      $region17: #{tpu_custom_call.1} parent=5 // pred_check
        %p191 = pneg %p190
      $region18: #{tpu_custom_call.1} parent=5 // pred_check_branch
        %193 = sbr.rel (%p191) target = $region20
      $region19: #{tpu_custom_call.1} parent=5 // pred_region
        // Predicated region
        $region21: #{tpu_custom_call.1} parent=19 // pred_check
          %p194 = pneg %p41
        $region22: #{tpu_custom_call.1} parent=19 // pred_check_branch
          %196 = sbr.rel (%p194) target = $region24
        $region23: #{tpu_custom_call.1} parent=19 // pred_region
          %p197 = scmp.lt.s32.totalorder %s21, 1
          %s198 = scalar_select %p197, %s21, 1
          %s199 = smul.addr %s198, 2
          %s200 = smul.addr %s199, 4
          %s201 = scalar_lea.vmem %s0, %s200
        $region24: #{tpu_custom_call.1} parent=19 // pred_fallthru
          _
        // Predicated region
        $region25: #{tpu_custom_call.1} parent=19 // pred_check
          %p202 = pneg %p67
        $region26: #{tpu_custom_call.1} parent=19 // pred_check_branch
          %204 = sbr.rel (%p202) target = $region28
        $region27: #{tpu_custom_call.1} parent=19 // pred_region
          %p205 = scmp.lt.s32.totalorder %s21, 1
          %s206 = scalar_select %p205, %s21, 1
          %s207 = smul.addr %s206, 8
          %s208 = smul.addr %s207, 8
          %s209 = scalar_lea.vmem %s1, %s208
        $region28: #{tpu_custom_call.1} parent=19 // pred_fallthru
          _
        // Predicated region
        $region29: #{tpu_custom_call.1} parent=19 // pred_check
          %p210 = pneg %p114
        $region30: #{tpu_custom_call.1} parent=19 // pred_check_branch
          %212 = sbr.rel (%p210) target = $region32
        $region31: #{tpu_custom_call.1} parent=19 // pred_region
          %s213 = sand.u32 %s104, 1
          %s214 = scalar_lea.sflag [#allocation5], %s213
          %s215 = sand.u32 %s104, 1
          %s216 = smul.addr %s215, 64
          %s217 = scalar_lea.vmem [#allocation4], %s216
          %s219 = ssub.s32 1024, 1024
          %220 = vsyncadd %s214, %s219
          %s221 = smul.addr %s21, 8
          %s222 = smul.addr %s221, 128
          %s223 = scalar_lea.hbm %s3, %s222
          %s224 = sshll.u32 %s217, 4
          %s225 = int_to_ptr.vmem [resolvable:$true] %s224
          %230 = dma.hbm_to_vmem [thread:$0]  %s223, 1024, %s225, %s214, 256, 256, 16
        $region32: #{tpu_custom_call.1} parent=19 // pred_fallthru
          _
      $region20: #{tpu_custom_call.1} parent=5 // pred_fallthru
        _
      %p231 = scmp.le.s32.totalorder 1, %s21
      %p232 = scmp.lt.s32.totalorder %s21, 3
      %p233 = pnand %p231, %p232
      %p234 = pneg %p233
      // Predicated region
      $region33: #{tpu_custom_call.1} parent=5 // pred_check
        _
      $region34: #{tpu_custom_call.1} parent=5 // pred_check_branch
        %236 = sbr.rel (%p233) target = $region36
      $region35: #{tpu_custom_call.1} parent=5 // pred_region
        %s237 = ssub.s32 %s21, 1
        %s238 = sand.u32 %s107, 1
        %s239 = scalar_lea.sflag [#allocation5], %s238
        %s240 = sand.u32 %s107, 1
        %s241 = smul.addr %s240, 64
        %s242 = scalar_lea.vmem [#allocation4], %s241
        // Predicated region
        $region37: #{tpu_custom_call.1} parent=35 // pred_check
          %p243 = pneg %p120
        $region38: #{tpu_custom_call.1} parent=35 // pred_check_branch
          %245 = sbr.rel (%p243) target = $region40
        $region39: #{tpu_custom_call.1} parent=35 // pred_region
          %246 = dma.done %s239, 1024
        $region40: #{tpu_custom_call.1} parent=35 // pred_fallthru
          _
        %p247 = scmp.lt.s32.totalorder %s26, 1
        %s248 = scalar_select %p247, %s26, 1
        %s249 = smul.addr %s248, 2
        %s250 = smul.addr %s249, 4
        %s251 = scalar_lea.vmem %s0, %s250
        %p252 = pneg %p47
        %p253 = pneg %p44
        %p254 = scmp.lt.s32.totalorder %s26, 1
        %s255 = scalar_select %p254, %s26, 1
        %s256 = smul.addr %s255, 8
        %s257 = smul.addr %s256, 8
        %s258 = scalar_lea.vmem %s1, %s257
        %p259 = pneg %p73
        %p260 = pneg %p70
        %p261 = pneg %p94
        %p262 = pneg %p91
        %s263 = sand.u32 %s107, 1
        %s264 = scalar_lea.sflag [#allocation5], %s263
        %s265 = sand.u32 %s107, 1
        %s266 = smul.addr %s265, 64
        %s267 = scalar_lea.vmem [#allocation4], %s266
        %p268 = pneg %p120
        %p269 = pneg %p117
        %p270 = pneg %p146
        %p271 = pneg %p143
        %s272 = sand.u32 %s133, 1
        %s273 = scalar_lea.sflag [#allocation6], %s272
        %s274 = sand.u32 %s133, 1
        %s275 = smul.addr %s274, 64
        %s276 = scalar_lea.vmem [#allocation7], %s275
        %p277 = pneg %p172
        %p278 = pneg %p169
        %s279 = sand.u32 %s159, 1
        %s280 = scalar_lea.sflag [#allocation9], %s279
        %s281 = sand.u32 %s159, 1
        %s282 = smul.addr %s281, 64
        %s283 = scalar_lea.vmem [#allocation8], %s282
        %p284 = scmp.lt.s32.totalorder %s26, 1
        %s285 = scalar_select %p284, %s26, 1
        %s286 = smul.addr %s285, 2
        %s287 = smul.addr %s286, 4
        %s288 = scalar_lea.vmem %s0, %s287
        %p289 = scmp.lt.s32.totalorder %s26, 1
        %s290 = scalar_select %p289, %s26, 1
        %s291 = smul.addr %s290, 8
        %s292 = smul.addr %s291, 8
        %s293 = scalar_lea.vmem %s1, %s292
        %v297 = vlaneseq
        %v298 = vand.u32 %v297, 127
        %v299 = vadd.s32 %v298, 128
        %vm300 = vcmp.lt.s32.totalorder %v298, 0
        %v301 = vsub.s32 0, %v298
        %v302 = vsel %vm300, %v301, %v298
        %v303 = vshrl.u32 %v302, 4
        %v304 = vand.u32 %v302, 15
        %v305 = vsub.s32 0, %v304
        %v306 = vsel %vm300, %v305, %v304
        %vm307 = vcmp.lt.s32.totalorder %v299, 0
        %v308 = vsub.s32 0, %v299
        %v309 = vsel %vm307, %v308, %v299
        %v310 = vshrl.u32 %v309, 4
        %v311 = vand.u32 %v309, 15
        %v312 = vsub.s32 0, %v311
        %v313 = vsel %vm307, %v312, %v311
        %vm314 = vcmp.ne.s32.totalorder %v306, 0
        %vm315 = vcmp.ne.s32.totalorder %v313, 0
        %vm316 = vcmp.lt.s32.totalorder %v306, 0
        %vm317 = vcmp.lt.s32.totalorder %v313, 0
        %vm318 = vmand %vm316, %vm314
        %vm319 = vmand %vm317, %vm315
        %v320 = vadd.s32 %v306, 16
        %v321 = vadd.s32 %v313, 16
        %v322 = vsel %vm318, %v320, %v306
        %v323 = vsel %vm319, %v321, %v313
        %vm324 = vcmp.ge.s32.totalorder %v322, 1
        %vm325 = vcmp.ge.s32.totalorder %v323, 1
        %vm326 = vcmp.lt.s32.totalorder %v322, 15
        %vm327 = vcmp.lt.s32.totalorder %v323, 15
        %328 = vst [vmem:[#allocation2] sm:$0xff] 0
        %329 = vst [vmem:[#allocation2 + $0x8] sm:$0xff] 0
        %vm330 = vcmask 277504
        %331 = vst.msk [vmem:[#allocation2 + $0x10] sm:$0xff] %vm330, 0
        %332 = vst [vmem:[#allocation2 + $0x18] sm:$0xff] 0
        %333 = vst [vmem:[#allocation2 + $0x20] sm:$0xff] 0
        %334 = vst.msk [vmem:[#allocation2 + $0x28] sm:$0xff] %vm330, 0
        %335 = vst [vmem:[#allocation2 + $0x30] sm:$0xff] 0
        %336 = vst [vmem:[#allocation2 + $0x38] sm:$0xff] 0
        %337 = vst.msk [vmem:[#allocation2 + $0x40] sm:$0xff] %vm330, 0
        %v338 = vld [vmem:[%s288] sm:$0xff]
        %v340 = vcombine.high %v338, %v338
        %v342 = vpack.c.bf16 %v338, %v338
        %v343 = vpack.c.bf16 %v340, %v340
        %346 = vrot.lane.b32.xlu0 %v342, 17
        %v347 = vpop.permute.xlu0 %346
        %348 = vrot.lane.b32.xlu0 %v343, 17
        %v349 = vpop.permute.xlu0 %348
        %vm350 = vcmask 138240
        %v351 = vsel %vm350, %v347, %v349
        %vm355 = vcmask 1041544
        %356 = vst.msk [vmem:[#allocation2] sm:$0x3] %vm355, %v347
        %357 = vst [vmem:[#allocation2 + $0x8] sm:$0x3] %v351
        %vm358 = vcmask 132096
        %359 = vst.msk [vmem:[#allocation2 + $0x10] sm:$0x3] %vm358, %v349
        %v360 = vld [vmem:[%s293] sm:$0xff]
        %v361 = vld [vmem:[%s293 + $0x8] sm:$0xff]
        %v362 = vld [vmem:[%s293 + $0x10] sm:$0xff]
        %v363 = vld [vmem:[%s293 + $0x18] sm:$0xff]
        %v364 = vld [vmem:[%s293 + $0x20] sm:$0xff]
        %v365 = vld [vmem:[%s293 + $0x28] sm:$0xff]
        %v366 = vld [vmem:[%s293 + $0x30] sm:$0xff]
        %v367 = vld [vmem:[%s293 + $0x38] sm:$0xff]
        %v368 = vpack.c.bf16 %v362, %v360
        %v369 = vpack.c.bf16 %v363, %v361
        %v370 = vpack.c.bf16 %v366, %v364
        %v371 = vpack.c.bf16 %v367, %v365
        %376 = vrot.lane.b32.xlu0 %v368, 17
        %v377 = vpop.permute.xlu0 %376
        %378 = vrot.lane.b32.xlu0 %v369, 17
        %v379 = vpop.permute.xlu0 %378
        %380 = vrot.lane.b32.xlu0 %v370, 17
        %v381 = vpop.permute.xlu0 %380
        %382 = vrot.lane.b32.xlu0 %v371, 17
        %v383 = vpop.permute.xlu0 %382
        %v384 = vsel %vm350, %v377, %v379
        %v385 = vsel %vm350, %v381, %v383
        %vm392 = vcmask 1047688
        %393 = vst.msk [vmem:[#allocation2 + $0x18] sm:$0xff] %vm392, %v377
        %394 = vst [vmem:[#allocation2 + $0x20] sm:$0xff] %v384
        %vm395 = vcmask 138240
        %396 = vst.msk [vmem:[#allocation2 + $0x28] sm:$0xff] %vm395, %v379
        %397 = vst.msk [vmem:[#allocation2 + $0x30] sm:$0xff] %vm392, %v381
        %398 = vst [vmem:[#allocation2 + $0x38] sm:$0xff] %v385
        %399 = vst.msk [vmem:[#allocation2 + $0x40] sm:$0xff] %vm395, %v383
        %v400 = vld [vmem:[#allocation2] sm:$0xff]
        %v401 = vld [vmem:[#allocation2 + $0x8] sm:$0xff]
        %v402 = vld [vmem:[#allocation2 + $0x18] sm:$0xff]
        %v403 = vld [vmem:[#allocation2 + $0x20] sm:$0xff]
        %v404 = vld [vmem:[#allocation2 + $0x30] sm:$0xff]
        %v405 = vld [vmem:[#allocation2 + $0x38] sm:$0xff]
        %v406 = vsel %vm324, 1, 0
        %v407 = vsel %vm325, 1, 0
        %vm408 = vcmp.eq.s32.totalorder %v406, 1
        %vm409 = vcmp.eq.s32.totalorder %v407, 1
        %vm410 = vmpackc.low %vm409, %vm408
        %v411 = vsel %vm410, 65537, 0
        %v412 = vlaneseq
        %v413 = vshrl.u32 %v412, 7
        %v414 = vsub.s32 0, %v413
        %v415 = vrot.slane %v411, %v414
        %v416 = vlaneseq
        %v417 = vshrl.u32 %v416, 7
        %v418 = vsub.s32 4, %v417
        %v419 = vrot.slane %v411, %v418
        %vm420 = vcmp.ne.s16.totalorder %v415, 0
        %vm421 = vcmp.ne.s16.totalorder %v419, 0
        %v422 = vsel %vm420, %v400, 0
        %v423 = vsel %vm421, %v401, 0
        %v424 = vsel %vm420, %v402, 0
        %v425 = vsel %vm421, %v403, 0
        %v426 = vsel %vm420, %v404, 0
        %v427 = vsel %vm421, %v405, 0
        %428 = vst [vmem:[#allocation3] sm:$0xff] %v422
        %429 = vst [vmem:[#allocation3 + $0x8] sm:$0xff] %v423
        %430 = vst [vmem:[#allocation3 + $0x10] sm:$0xff] %v424
        %431 = vst [vmem:[#allocation3 + $0x18] sm:$0xff] %v425
        %432 = vst [vmem:[#allocation3 + $0x20] sm:$0xff] %v426
        %433 = vst [vmem:[#allocation3 + $0x28] sm:$0xff] %v427
        %v434 = vld [vmem:[#allocation2] sm:$0xff]
        %v435 = vld [vmem:[#allocation2 + $0x8] sm:$0xff]
        %v436 = vld [vmem:[#allocation2 + $0x10] sm:$0xff]
        %v437 = vld [vmem:[#allocation2 + $0x18] sm:$0xff]
        %v438 = vld [vmem:[#allocation2 + $0x20] sm:$0xff]
        %v439 = vld [vmem:[#allocation2 + $0x28] sm:$0xff]
        %v440 = vld [vmem:[#allocation2 + $0x30] sm:$0xff]
        %v441 = vld [vmem:[#allocation2 + $0x38] sm:$0xff]
        %v442 = vld [vmem:[#allocation2 + $0x40] sm:$0xff]
        %452 = vrot.lane.b32.xlu0 %v434, 127
        %v453 = vpop.permute.xlu0 %452
        %454 = vrot.lane.b32.xlu0 %v435, 127
        %v455 = vpop.permute.xlu0 %454
        %456 = vrot.lane.b32.xlu0 %v436, 127
        %v457 = vpop.permute.xlu0 %456
        %458 = vrot.lane.b32.xlu0 %v437, 127
        %v459 = vpop.permute.xlu0 %458
        %460 = vrot.lane.b32.xlu0 %v438, 127
        %v461 = vpop.permute.xlu0 %460
        %462 = vrot.lane.b32.xlu0 %v439, 127
        %v463 = vpop.permute.xlu0 %462
        %464 = vrot.lane.b32.xlu0 %v440, 127
        %v465 = vpop.permute.xlu0 %464
        %466 = vrot.lane.b32.xlu0 %v441, 127
        %v467 = vpop.permute.xlu0 %466
        %468 = vrot.lane.b32.xlu0 %v442, 127
        %v469 = vpop.permute.xlu0 %468
        %vm470 = vcmask 1039360
        %v471 = vsel %vm470, %v453, %v455
        %v472 = vsel %vm470, %v455, %v457
        %v473 = vsel %vm470, %v459, %v461
        %v474 = vsel %vm470, %v461, %v463
        %v475 = vsel %vm470, %v465, %v467
        %v476 = vsel %vm470, %v467, %v469
        %483 = vst [vmem:[#allocation3 + $0x30] sm:$0xff] %v471
        %484 = vst [vmem:[#allocation3 + $0x38] sm:$0xff] %v472
        %485 = vst [vmem:[#allocation3 + $0x40] sm:$0xff] %v473
        %486 = vst [vmem:[#allocation3 + $0x48] sm:$0xff] %v474
        %487 = vst [vmem:[#allocation3 + $0x50] sm:$0xff] %v475
        %488 = vst [vmem:[#allocation3 + $0x58] sm:$0xff] %v476
        %v489 = vld [vmem:[#allocation2] sm:$0xff]
        %v490 = vld [vmem:[#allocation2 + $0x8] sm:$0xff]
        %v491 = vld [vmem:[#allocation2 + $0x10] sm:$0xff]
        %v492 = vld [vmem:[#allocation2 + $0x18] sm:$0xff]
        %v493 = vld [vmem:[#allocation2 + $0x20] sm:$0xff]
        %v494 = vld [vmem:[#allocation2 + $0x28] sm:$0xff]
        %v495 = vld [vmem:[#allocation2 + $0x30] sm:$0xff]
        %v496 = vld [vmem:[#allocation2 + $0x38] sm:$0xff]
        %v497 = vld [vmem:[#allocation2 + $0x40] sm:$0xff]
        %v498 = vsel %vm326, 1, 0
        %v499 = vsel %vm327, 1, 0
        %vm500 = vcmp.eq.s32.totalorder %v498, 1
        %vm501 = vcmp.eq.s32.totalorder %v499, 1
        %vm502 = vmpackc.low %vm501, %vm500
        %v503 = vsel %vm502, 65537, 0
        %v504 = vlaneseq
        %v505 = vshrl.u32 %v504, 7
        %v506 = vsub.s32 0, %v505
        %v507 = vrot.slane %v503, %v506
        %v508 = vlaneseq
        %v509 = vshrl.u32 %v508, 7
        %v510 = vsub.s32 4, %v509
        %v511 = vrot.slane %v503, %v510
        %512 = vrot.lane.b32.xlu0 %v507, 2
        %v513 = vpop.permute.xlu0 %512
        %514 = vrot.lane.b32.xlu0 %v511, 2
        %v515 = vpop.permute.xlu0 %514
        %vm516 = vcmask 15360
        %v517 = vsel %vm516, %v513, %v515
        %vm518 = vcmp.ne.s16.totalorder %v513, 0
        %vm519 = vcmp.ne.s16.totalorder %v517, 0
        %vm520 = vcmp.ne.s16.totalorder %v515, 0
        %v521 = vsel %vm518, %v489, 0
        %v522 = vsel %vm519, %v490, 0
        %v523 = vsel %vm520, %v491, 0
        %v524 = vsel %vm518, %v492, 0
        %v525 = vsel %vm519, %v493, 0
        %v526 = vsel %vm520, %v494, 0
        %v527 = vsel %vm518, %v495, 0
        %v528 = vsel %vm519, %v496, 0
        %v529 = vsel %vm520, %v497, 0
        %539 = vrot.lane.b32.xlu0 %v521, 126
        %v540 = vpop.permute.xlu0 %539
        %541 = vrot.lane.b32.xlu0 %v522, 126
        %v542 = vpop.permute.xlu0 %541
        %543 = vrot.lane.b32.xlu0 %v523, 126
        %v544 = vpop.permute.xlu0 %543
        %545 = vrot.lane.b32.xlu0 %v524, 126
        %v546 = vpop.permute.xlu0 %545
        %547 = vrot.lane.b32.xlu0 %v525, 126
        %v548 = vpop.permute.xlu0 %547
        %549 = vrot.lane.b32.xlu0 %v526, 126
        %v550 = vpop.permute.xlu0 %549
        %551 = vrot.lane.b32.xlu0 %v527, 126
        %v552 = vpop.permute.xlu0 %551
        %553 = vrot.lane.b32.xlu0 %v528, 126
        %v554 = vpop.permute.xlu0 %553
        %555 = vrot.lane.b32.xlu0 %v529, 126
        %v556 = vpop.permute.xlu0 %555
        %vm557 = vcmask 1031168
        %v558 = vsel %vm557, %v540, %v542
        %v559 = vsel %vm557, %v542, %v544
        %v560 = vsel %vm557, %v546, %v548
        %v561 = vsel %vm557, %v548, %v550
        %v562 = vsel %vm557, %v552, %v554
        %v563 = vsel %vm557, %v554, %v556
        %570 = vst [vmem:[#allocation3 + $0x60] sm:$0xff] %v558
        %571 = vst [vmem:[#allocation3 + $0x68] sm:$0xff] %v559
        %572 = vst [vmem:[#allocation3 + $0x70] sm:$0xff] %v560
        %573 = vst [vmem:[#allocation3 + $0x78] sm:$0xff] %v561
        %574 = vst [vmem:[#allocation3 + $0x80] sm:$0xff] %v562
        %575 = vst [vmem:[#allocation3 + $0x88] sm:$0xff] %v563
        %v576 = vld [vmem:[#allocation2] sm:$0xff]
        %v577 = vld [vmem:[#allocation2 + $0x8] sm:$0xff]
        %v578 = vld [vmem:[#allocation2 + $0x10] sm:$0xff]
        %v579 = vld [vmem:[#allocation2 + $0x18] sm:$0xff]
        %v580 = vld [vmem:[#allocation2 + $0x20] sm:$0xff]
        %v581 = vld [vmem:[#allocation2 + $0x28] sm:$0xff]
        %v582 = vld [vmem:[#allocation2 + $0x30] sm:$0xff]
        %v583 = vld [vmem:[#allocation2 + $0x38] sm:$0xff]
        %v584 = vld [vmem:[#allocation2 + $0x40] sm:$0xff]
        %585 = vrot.lane.b32.xlu0 %v415, 16
        %v586 = vpop.permute.xlu0 %585
        %587 = vrot.lane.b32.xlu0 %v419, 16
        %v588 = vpop.permute.xlu0 %587
        %vm589 = vcmask 130048
        %v590 = vsel %vm589, %v586, %v588
        %vm591 = vcmp.ne.s16.totalorder %v586, 0
        %vm592 = vcmp.ne.s16.totalorder %v590, 0
        %vm593 = vcmp.ne.s16.totalorder %v588, 0
        %v594 = vsel %vm591, %v576, 0
        %v595 = vsel %vm592, %v577, 0
        %v596 = vsel %vm593, %v578, 0
        %v597 = vsel %vm591, %v579, 0
        %v598 = vsel %vm592, %v580, 0
        %v599 = vsel %vm593, %v581, 0
        %v600 = vsel %vm591, %v582, 0
        %v601 = vsel %vm592, %v583, 0
        %v602 = vsel %vm593, %v584, 0
        %612 = vrot.lane.b32.xlu0 %v594, 112
        %v613 = vpop.permute.xlu0 %612
        %614 = vrot.lane.b32.xlu0 %v595, 112
        %v615 = vpop.permute.xlu0 %614
        %616 = vrot.lane.b32.xlu0 %v596, 112
        %v617 = vpop.permute.xlu0 %616
        %618 = vrot.lane.b32.xlu0 %v597, 112
        %v619 = vpop.permute.xlu0 %618
        %620 = vrot.lane.b32.xlu0 %v598, 112
        %v621 = vpop.permute.xlu0 %620
        %622 = vrot.lane.b32.xlu0 %v599, 112
        %v623 = vpop.permute.xlu0 %622
        %624 = vrot.lane.b32.xlu0 %v600, 112
        %v625 = vpop.permute.xlu0 %624
        %626 = vrot.lane.b32.xlu0 %v601, 112
        %v627 = vpop.permute.xlu0 %626
        %628 = vrot.lane.b32.xlu0 %v602, 112
        %v629 = vpop.permute.xlu0 %628
        %vm630 = vcmask 916480
        %v631 = vsel %vm630, %v613, %v615
        %v632 = vsel %vm630, %v615, %v617
        %v633 = vsel %vm630, %v619, %v621
        %v634 = vsel %vm630, %v621, %v623
        %v635 = vsel %vm630, %v625, %v627
        %v636 = vsel %vm630, %v627, %v629
        %643 = vst [vmem:[#allocation3 + $0x90] sm:$0xff] %v631
        %644 = vst [vmem:[#allocation3 + $0x98] sm:$0xff] %v632
        %645 = vst [vmem:[#allocation3 + $0xa0] sm:$0xff] %v633
        %646 = vst [vmem:[#allocation3 + $0xa8] sm:$0xff] %v634
        %647 = vst [vmem:[#allocation3 + $0xb0] sm:$0xff] %v635
        %648 = vst [vmem:[#allocation3 + $0xb8] sm:$0xff] %v636
        %v649 = vld [vmem:[#allocation2] sm:$0xff]
        %v650 = vld [vmem:[#allocation2 + $0x8] sm:$0xff]
        %v651 = vld [vmem:[#allocation2 + $0x10] sm:$0xff]
        %v652 = vld [vmem:[#allocation2 + $0x18] sm:$0xff]
        %v653 = vld [vmem:[#allocation2 + $0x20] sm:$0xff]
        %v654 = vld [vmem:[#allocation2 + $0x28] sm:$0xff]
        %v655 = vld [vmem:[#allocation2 + $0x30] sm:$0xff]
        %v656 = vld [vmem:[#allocation2 + $0x38] sm:$0xff]
        %v657 = vld [vmem:[#allocation2 + $0x40] sm:$0xff]
        %667 = vrot.lane.b32.xlu0 %v649, 111
        %v668 = vpop.permute.xlu0 %667
        %669 = vrot.lane.b32.xlu0 %v650, 111
        %v670 = vpop.permute.xlu0 %669
        %671 = vrot.lane.b32.xlu0 %v651, 111
        %v672 = vpop.permute.xlu0 %671
        %673 = vrot.lane.b32.xlu0 %v652, 111
        %v674 = vpop.permute.xlu0 %673
        %675 = vrot.lane.b32.xlu0 %v653, 111
        %v676 = vpop.permute.xlu0 %675
        %677 = vrot.lane.b32.xlu0 %v654, 111
        %v678 = vpop.permute.xlu0 %677
        %679 = vrot.lane.b32.xlu0 %v655, 111
        %v680 = vpop.permute.xlu0 %679
        %681 = vrot.lane.b32.xlu0 %v656, 111
        %v682 = vpop.permute.xlu0 %681
        %683 = vrot.lane.b32.xlu0 %v657, 111
        %v684 = vpop.permute.xlu0 %683
        %vm685 = vcmask 908288
        %v686 = vsel %vm685, %v668, %v670
        %v687 = vsel %vm685, %v670, %v672
        %v688 = vsel %vm685, %v674, %v676
        %v689 = vsel %vm685, %v676, %v678
        %v690 = vsel %vm685, %v680, %v682
        %v691 = vsel %vm685, %v682, %v684
        %698 = vst [vmem:[#allocation3 + $0xc0] sm:$0xff] %v686
        %699 = vst [vmem:[#allocation3 + $0xc8] sm:$0xff] %v687
        %700 = vst [vmem:[#allocation3 + $0xd0] sm:$0xff] %v688
        %701 = vst [vmem:[#allocation3 + $0xd8] sm:$0xff] %v689
        %702 = vst [vmem:[#allocation3 + $0xe0] sm:$0xff] %v690
        %703 = vst [vmem:[#allocation3 + $0xe8] sm:$0xff] %v691
        %v704 = vld [vmem:[#allocation2] sm:$0xff]
        %v705 = vld [vmem:[#allocation2 + $0x8] sm:$0xff]
        %v706 = vld [vmem:[#allocation2 + $0x10] sm:$0xff]
        %v707 = vld [vmem:[#allocation2 + $0x18] sm:$0xff]
        %v708 = vld [vmem:[#allocation2 + $0x20] sm:$0xff]
        %v709 = vld [vmem:[#allocation2 + $0x28] sm:$0xff]
        %v710 = vld [vmem:[#allocation2 + $0x30] sm:$0xff]
        %v711 = vld [vmem:[#allocation2 + $0x38] sm:$0xff]
        %v712 = vld [vmem:[#allocation2 + $0x40] sm:$0xff]
        %713 = vrot.lane.b32.xlu0 %v507, 18
        %v714 = vpop.permute.xlu0 %713
        %715 = vrot.lane.b32.xlu0 %v511, 18
        %v716 = vpop.permute.xlu0 %715
        %vm717 = vcmask 146432
        %v718 = vsel %vm717, %v714, %v716
        %vm719 = vcmp.ne.s16.totalorder %v714, 0
        %vm720 = vcmp.ne.s16.totalorder %v718, 0
        %vm721 = vcmp.ne.s16.totalorder %v716, 0
        %v722 = vsel %vm719, %v704, 0
        %v723 = vsel %vm720, %v705, 0
        %v724 = vsel %vm721, %v706, 0
        %v725 = vsel %vm719, %v707, 0
        %v726 = vsel %vm720, %v708, 0
        %v727 = vsel %vm721, %v709, 0
        %v728 = vsel %vm719, %v710, 0
        %v729 = vsel %vm720, %v711, 0
        %v730 = vsel %vm721, %v712, 0
        %740 = vrot.lane.b32.xlu0 %v722, 110
        %v741 = vpop.permute.xlu0 %740
        %742 = vrot.lane.b32.xlu0 %v723, 110
        %v743 = vpop.permute.xlu0 %742
        %744 = vrot.lane.b32.xlu0 %v724, 110
        %v745 = vpop.permute.xlu0 %744
        %746 = vrot.lane.b32.xlu0 %v725, 110
        %v747 = vpop.permute.xlu0 %746
        %748 = vrot.lane.b32.xlu0 %v726, 110
        %v749 = vpop.permute.xlu0 %748
        %750 = vrot.lane.b32.xlu0 %v727, 110
        %v751 = vpop.permute.xlu0 %750
        %752 = vrot.lane.b32.xlu0 %v728, 110
        %v753 = vpop.permute.xlu0 %752
        %754 = vrot.lane.b32.xlu0 %v729, 110
        %v755 = vpop.permute.xlu0 %754
        %756 = vrot.lane.b32.xlu0 %v730, 110
        %v757 = vpop.permute.xlu0 %756
        %vm758 = vcmask 900096
        %v759 = vsel %vm758, %v741, %v743
        %v760 = vsel %vm758, %v743, %v745
        %v761 = vsel %vm758, %v747, %v749
        %v762 = vsel %vm758, %v749, %v751
        %v763 = vsel %vm758, %v753, %v755
        %v764 = vsel %vm758, %v755, %v757
        %771 = vst [vmem:[#allocation3 + $0xf0] sm:$0xff] %v759
        %772 = vst [vmem:[#allocation3 + $0xf8] sm:$0xff] %v760
        %773 = vst [vmem:[#allocation3 + $0x100] sm:$0xff] %v761
        %774 = vst [vmem:[#allocation3 + $0x108] sm:$0xff] %v762
        %775 = vst [vmem:[#allocation3 + $0x110] sm:$0xff] %v763
        %776 = vst [vmem:[#allocation3 + $0x118] sm:$0xff] %v764
        %v777 = vld [vmem:[#allocation2] sm:$0xff]
        %v778 = vld [vmem:[#allocation2 + $0x8] sm:$0xff]
        %v779 = vld [vmem:[#allocation2 + $0x10] sm:$0xff]
        %v780 = vld [vmem:[#allocation2 + $0x18] sm:$0xff]
        %v781 = vld [vmem:[#allocation2 + $0x20] sm:$0xff]
        %v782 = vld [vmem:[#allocation2 + $0x28] sm:$0xff]
        %v783 = vld [vmem:[#allocation2 + $0x30] sm:$0xff]
        %v784 = vld [vmem:[#allocation2 + $0x38] sm:$0xff]
        %v785 = vld [vmem:[#allocation2 + $0x40] sm:$0xff]
        %786 = vrot.lane.b32.xlu0 %v415, 32
        %v787 = vpop.permute.xlu0 %786
        %788 = vrot.lane.b32.xlu0 %v419, 32
        %v789 = vpop.permute.xlu0 %788
        %vm790 = vcmask 261120
        %v791 = vsel %vm790, %v787, %v789
        %vm792 = vcmp.ne.s16.totalorder %v787, 0
        %vm793 = vcmp.ne.s16.totalorder %v791, 0
        %vm794 = vcmp.ne.s16.totalorder %v789, 0
        %v795 = vsel %vm792, %v777, 0
        %v796 = vsel %vm793, %v778, 0
        %v797 = vsel %vm794, %v779, 0
        %v798 = vsel %vm792, %v780, 0
        %v799 = vsel %vm793, %v781, 0
        %v800 = vsel %vm794, %v782, 0
        %v801 = vsel %vm792, %v783, 0
        %v802 = vsel %vm793, %v784, 0
        %v803 = vsel %vm794, %v785, 0
        %813 = vrot.lane.b32.xlu0 %v795, 96
        %v814 = vpop.permute.xlu0 %813
        %815 = vrot.lane.b32.xlu0 %v796, 96
        %v816 = vpop.permute.xlu0 %815
        %817 = vrot.lane.b32.xlu0 %v797, 96
        %v818 = vpop.permute.xlu0 %817
        %819 = vrot.lane.b32.xlu0 %v798, 96
        %v820 = vpop.permute.xlu0 %819
        %821 = vrot.lane.b32.xlu0 %v799, 96
        %v822 = vpop.permute.xlu0 %821
        %823 = vrot.lane.b32.xlu0 %v800, 96
        %v824 = vpop.permute.xlu0 %823
        %825 = vrot.lane.b32.xlu0 %v801, 96
        %v826 = vpop.permute.xlu0 %825
        %827 = vrot.lane.b32.xlu0 %v802, 96
        %v828 = vpop.permute.xlu0 %827
        %829 = vrot.lane.b32.xlu0 %v803, 96
        %v830 = vpop.permute.xlu0 %829
        %vm831 = vcmask 785408
        %v832 = vsel %vm831, %v814, %v816
        %v833 = vsel %vm831, %v816, %v818
        %v834 = vsel %vm831, %v820, %v822
        %v835 = vsel %vm831, %v822, %v824
        %v836 = vsel %vm831, %v826, %v828
        %v837 = vsel %vm831, %v828, %v830
        %844 = vst [vmem:[#allocation3 + $0x120] sm:$0xff] %v832
        %845 = vst [vmem:[#allocation3 + $0x128] sm:$0xff] %v833
        %846 = vst [vmem:[#allocation3 + $0x130] sm:$0xff] %v834
        %847 = vst [vmem:[#allocation3 + $0x138] sm:$0xff] %v835
        %848 = vst [vmem:[#allocation3 + $0x140] sm:$0xff] %v836
        %849 = vst [vmem:[#allocation3 + $0x148] sm:$0xff] %v837
        %v850 = vld [vmem:[#allocation2] sm:$0xff]
        %v851 = vld [vmem:[#allocation2 + $0x8] sm:$0xff]
        %v852 = vld [vmem:[#allocation2 + $0x10] sm:$0xff]
        %v853 = vld [vmem:[#allocation2 + $0x18] sm:$0xff]
        %v854 = vld [vmem:[#allocation2 + $0x20] sm:$0xff]
        %v855 = vld [vmem:[#allocation2 + $0x28] sm:$0xff]
        %v856 = vld [vmem:[#allocation2 + $0x30] sm:$0xff]
        %v857 = vld [vmem:[#allocation2 + $0x38] sm:$0xff]
        %v858 = vld [vmem:[#allocation2 + $0x40] sm:$0xff]
        %868 = vrot.lane.b32.xlu0 %v850, 95
        %v869 = vpop.permute.xlu0 %868
        %870 = vrot.lane.b32.xlu0 %v851, 95
        %v871 = vpop.permute.xlu0 %870
        %872 = vrot.lane.b32.xlu0 %v852, 95
        %v873 = vpop.permute.xlu0 %872
        %874 = vrot.lane.b32.xlu0 %v853, 95
        %v875 = vpop.permute.xlu0 %874
        %876 = vrot.lane.b32.xlu0 %v854, 95
        %v877 = vpop.permute.xlu0 %876
        %878 = vrot.lane.b32.xlu0 %v855, 95
        %v879 = vpop.permute.xlu0 %878
        %880 = vrot.lane.b32.xlu0 %v856, 95
        %v881 = vpop.permute.xlu0 %880
        %882 = vrot.lane.b32.xlu0 %v857, 95
        %v883 = vpop.permute.xlu0 %882
        %884 = vrot.lane.b32.xlu0 %v858, 95
        %v885 = vpop.permute.xlu0 %884
        %vm886 = vcmask 777216
        %v887 = vsel %vm886, %v869, %v871
        %v888 = vsel %vm886, %v871, %v873
        %v889 = vsel %vm886, %v875, %v877
        %v890 = vsel %vm886, %v877, %v879
        %v891 = vsel %vm886, %v881, %v883
        %v892 = vsel %vm886, %v883, %v885
        %899 = vst [vmem:[#allocation3 + $0x150] sm:$0xff] %v887
        %900 = vst [vmem:[#allocation3 + $0x158] sm:$0xff] %v888
        %901 = vst [vmem:[#allocation3 + $0x160] sm:$0xff] %v889
        %902 = vst [vmem:[#allocation3 + $0x168] sm:$0xff] %v890
        %903 = vst [vmem:[#allocation3 + $0x170] sm:$0xff] %v891
        %904 = vst [vmem:[#allocation3 + $0x178] sm:$0xff] %v892
        %v905 = vld [vmem:[#allocation2] sm:$0xff]
        %v906 = vld [vmem:[#allocation2 + $0x8] sm:$0xff]
        %v907 = vld [vmem:[#allocation2 + $0x10] sm:$0xff]
        %v908 = vld [vmem:[#allocation2 + $0x18] sm:$0xff]
        %v909 = vld [vmem:[#allocation2 + $0x20] sm:$0xff]
        %v910 = vld [vmem:[#allocation2 + $0x28] sm:$0xff]
        %v911 = vld [vmem:[#allocation2 + $0x30] sm:$0xff]
        %v912 = vld [vmem:[#allocation2 + $0x38] sm:$0xff]
        %v913 = vld [vmem:[#allocation2 + $0x40] sm:$0xff]
        %914 = vrot.lane.b32.xlu0 %v507, 34
        %v915 = vpop.permute.xlu0 %914
        %916 = vrot.lane.b32.xlu0 %v511, 34
        %v917 = vpop.permute.xlu0 %916
        %vm918 = vcmask 277504
        %v919 = vsel %vm918, %v915, %v917
        %vm920 = vcmp.ne.s16.totalorder %v915, 0
        %vm921 = vcmp.ne.s16.totalorder %v919, 0
        %vm922 = vcmp.ne.s16.totalorder %v917, 0
        %v923 = vsel %vm920, %v905, 0
        %v924 = vsel %vm921, %v906, 0
        %v925 = vsel %vm922, %v907, 0
        %v926 = vsel %vm920, %v908, 0
        %v927 = vsel %vm921, %v909, 0
        %v928 = vsel %vm922, %v910, 0
        %v929 = vsel %vm920, %v911, 0
        %v930 = vsel %vm921, %v912, 0
        %v931 = vsel %vm922, %v913, 0
        %941 = vrot.lane.b32.xlu0 %v923, 94
        %v942 = vpop.permute.xlu0 %941
        %943 = vrot.lane.b32.xlu0 %v924, 94
        %v944 = vpop.permute.xlu0 %943
        %945 = vrot.lane.b32.xlu0 %v925, 94
        %v946 = vpop.permute.xlu0 %945
        %947 = vrot.lane.b32.xlu0 %v926, 94
        %v948 = vpop.permute.xlu0 %947
        %949 = vrot.lane.b32.xlu0 %v927, 94
        %v950 = vpop.permute.xlu0 %949
        %951 = vrot.lane.b32.xlu0 %v928, 94
        %v952 = vpop.permute.xlu0 %951
        %953 = vrot.lane.b32.xlu0 %v929, 94
        %v954 = vpop.permute.xlu0 %953
        %955 = vrot.lane.b32.xlu0 %v930, 94
        %v956 = vpop.permute.xlu0 %955
        %957 = vrot.lane.b32.xlu0 %v931, 94
        %v958 = vpop.permute.xlu0 %957
        %vm959 = vcmask 769024
        %v960 = vsel %vm959, %v942, %v944
        %v961 = vsel %vm959, %v944, %v946
        %v962 = vsel %vm959, %v948, %v950
        %v963 = vsel %vm959, %v950, %v952
        %v964 = vsel %vm959, %v954, %v956
        %v965 = vsel %vm959, %v956, %v958
        %972 = vst [vmem:[#allocation3 + $0x180] sm:$0xff] %v960
        %973 = vst [vmem:[#allocation3 + $0x188] sm:$0xff] %v961
        %974 = vst [vmem:[#allocation3 + $0x190] sm:$0xff] %v962
        %975 = vst [vmem:[#allocation3 + $0x198] sm:$0xff] %v963
        %976 = vst [vmem:[#allocation3 + $0x1a0] sm:$0xff] %v964
        %977 = vst [vmem:[#allocation3 + $0x1a8] sm:$0xff] %v965
        %v978 = vlaneseq
        %v979 = vshrl.u32 %v978, 7
        %v980 = vadd.s32 %v979, 8
        %vm981 = vcmp.eq.s32.totalorder %v979, 0
        %vm982 = vcmp.eq.s32.totalorder %v980, 0
        %v983 = vsel %vm981, 1, 0
        %v984 = vsel %vm982, 1, 0
        %v985 = vcvt.s32.f32 %v983
        %v986 = vcvt.s32.f32 %v984
        %v987 = vpack.c.bf16 %v986, %v985
        %988 = vst [vmem:[#allocation3 + $0x1b0] sm:$0xff] %v987
        %989 = vst [vmem:[#allocation3 + $0x1b8] sm:$0xff] %v987
        %v990 = vld [vmem:[%s2] sm:$0xff]
        %v991 = vld [vmem:[%s2 + $0x8] sm:$0xff]
        %v992 = vld [vmem:[%s2 + $0x10] sm:$0xff]
        %v993 = vld [vmem:[%s2 + $0x18] sm:$0xff]
        %v994 = vld [vmem:[%s2 + $0x20] sm:$0xff]
        %v995 = vld [vmem:[%s2 + $0x28] sm:$0xff]
        %v996 = vld [vmem:[%s2 + $0x30] sm:$0xff]
        %v997 = vld [vmem:[%s2 + $0x38] sm:$0xff]
        %v998 = vld [vmem:[%s2 + $0x40] sm:$0xff]
        %v999 = vld [vmem:[%s2 + $0x48] sm:$0xff]
        %v1000 = vld [vmem:[%s2 + $0x50] sm:$0xff]
        %v1001 = vld [vmem:[%s2 + $0x58] sm:$0xff]
        %v1002 = vld [vmem:[%s2 + $0x60] sm:$0xff]
        %v1003 = vld [vmem:[%s2 + $0x68] sm:$0xff]
        %v1004 = vld [vmem:[%s2 + $0x70] sm:$0xff]
        %v1005 = vld [vmem:[%s2 + $0x78] sm:$0xff]
        %v1006 = vld [vmem:[%s2 + $0x80] sm:$0xff]
        %v1007 = vld [vmem:[%s2 + $0x88] sm:$0xff]
        %v1008 = vld [vmem:[%s2 + $0x90] sm:$0xff]
        %v1009 = vld [vmem:[%s2 + $0x98] sm:$0xff]
        %v1010 = vld [vmem:[%s2 + $0xa0] sm:$0xff]
        %v1011 = vld [vmem:[%s2 + $0xa8] sm:$0xff]
        %v1012 = vld [vmem:[%s2 + $0xb0] sm:$0xff]
        %v1013 = vld [vmem:[%s2 + $0xb8] sm:$0xff]
        %v1014 = vld [vmem:[%s2 + $0xc0] sm:$0xff]
        %v1015 = vld [vmem:[%s2 + $0xc8] sm:$0xff]
        %v1016 = vld [vmem:[%s2 + $0xd0] sm:$0xff]
        %v1017 = vld [vmem:[%s2 + $0xd8] sm:$0xff]
        %v1018 = vld [vmem:[%s2 + $0xe0] sm:$0xff]
        %v1019 = vld [vmem:[%s2 + $0xe8] sm:$0xff]
        %v1020 = vld [vmem:[%s2 + $0xf0] sm:$0xff]
        %v1021 = vld [vmem:[%s2 + $0xf8] sm:$0xff]
        %v1022 = vld [vmem:[#allocation3] sm:$0xff]
        %v1023 = vld [vmem:[#allocation3 + $0x8] sm:$0xff]
        %v1024 = vld [vmem:[#allocation3 + $0x10] sm:$0xff]
        %v1025 = vld [vmem:[#allocation3 + $0x18] sm:$0xff]
        %v1026 = vld [vmem:[#allocation3 + $0x20] sm:$0xff]
        %v1027 = vld [vmem:[#allocation3 + $0x28] sm:$0xff]
        %v1028 = vld [vmem:[#allocation3 + $0x30] sm:$0xff]
        %v1029 = vld [vmem:[#allocation3 + $0x38] sm:$0xff]
        %v1030 = vld [vmem:[#allocation3 + $0x40] sm:$0xff]
        %v1031 = vld [vmem:[#allocation3 + $0x48] sm:$0xff]
        %v1032 = vld [vmem:[#allocation3 + $0x50] sm:$0xff]
        %v1033 = vld [vmem:[#allocation3 + $0x58] sm:$0xff]
        %v1034 = vld [vmem:[#allocation3 + $0x60] sm:$0xff]
        %v1035 = vld [vmem:[#allocation3 + $0x68] sm:$0xff]
        %v1036 = vld [vmem:[#allocation3 + $0x70] sm:$0xff]
        %v1037 = vld [vmem:[#allocation3 + $0x78] sm:$0xff]
        %v1038 = vld [vmem:[#allocation3 + $0x80] sm:$0xff]
        %v1039 = vld [vmem:[#allocation3 + $0x88] sm:$0xff]
        %v1040 = vld [vmem:[#allocation3 + $0x90] sm:$0xff]
        %v1041 = vld [vmem:[#allocation3 + $0x98] sm:$0xff]
        %v1042 = vld [vmem:[#allocation3 + $0xa0] sm:$0xff]
        %v1043 = vld [vmem:[#allocation3 + $0xa8] sm:$0xff]
        %v1044 = vld [vmem:[#allocation3 + $0xb0] sm:$0xff]
        %v1045 = vld [vmem:[#allocation3 + $0xb8] sm:$0xff]
        %v1046 = vld [vmem:[#allocation3 + $0xc0] sm:$0xff]
        %v1047 = vld [vmem:[#allocation3 + $0xc8] sm:$0xff]
        %v1048 = vld [vmem:[#allocation3 + $0xd0] sm:$0xff]
        %v1049 = vld [vmem:[#allocation3 + $0xd8] sm:$0xff]
        %v1050 = vld [vmem:[#allocation3 + $0xe0] sm:$0xff]
        %v1051 = vld [vmem:[#allocation3 + $0xe8] sm:$0xff]
        %v1052 = vld [vmem:[#allocation3 + $0xf0] sm:$0xff]
        %v1053 = vld [vmem:[#allocation3 + $0xf8] sm:$0xff]
        %v1054 = vld [vmem:[#allocation3 + $0x100] sm:$0xff]
        %v1055 = vld [vmem:[#allocation3 + $0x108] sm:$0xff]
        %v1056 = vld [vmem:[#allocation3 + $0x110] sm:$0xff]
        %v1057 = vld [vmem:[#allocation3 + $0x118] sm:$0xff]
        %v1058 = vld [vmem:[#allocation3 + $0x120] sm:$0xff]
        %v1059 = vld [vmem:[#allocation3 + $0x128] sm:$0xff]
        %v1060 = vld [vmem:[#allocation3 + $0x130] sm:$0xff]
        %v1061 = vld [vmem:[#allocation3 + $0x138] sm:$0xff]
        %v1062 = vld [vmem:[#allocation3 + $0x140] sm:$0xff]
        %v1063 = vld [vmem:[#allocation3 + $0x148] sm:$0xff]
        %v1064 = vld [vmem:[#allocation3 + $0x150] sm:$0xff]
        %v1065 = vld [vmem:[#allocation3 + $0x158] sm:$0xff]
        %v1066 = vld [vmem:[#allocation3 + $0x160] sm:$0xff]
        %v1067 = vld [vmem:[#allocation3 + $0x168] sm:$0xff]
        %v1068 = vld [vmem:[#allocation3 + $0x170] sm:$0xff]
        %v1069 = vld [vmem:[#allocation3 + $0x178] sm:$0xff]
        %v1070 = vld [vmem:[#allocation3 + $0x180] sm:$0xff]
        %v1071 = vld [vmem:[#allocation3 + $0x188] sm:$0xff]
        %v1072 = vld [vmem:[#allocation3 + $0x190] sm:$0xff]
        %v1073 = vld [vmem:[#allocation3 + $0x198] sm:$0xff]
        %v1074 = vld [vmem:[#allocation3 + $0x1a0] sm:$0xff]
        %v1075 = vld [vmem:[#allocation3 + $0x1a8] sm:$0xff]
        %v1076 = vld [vmem:[#allocation3 + $0x1b0] sm:$0xff]
        %v1077 = vld [vmem:[#allocation3 + $0x1b8] sm:$0xff]
        %v1110 = vunpack.c.l.b16 %v990
        %v1111 = vunpack.c.h.b16 %v990
        %v1112 = vunpack.c.l.b16 %v991
        %v1113 = vunpack.c.h.b16 %v991
        %v1114 = vunpack.c.l.b16 %v992
        %v1115 = vunpack.c.h.b16 %v992
        %v1116 = vunpack.c.l.b16 %v993
        %v1117 = vunpack.c.h.b16 %v993
        %v1118 = vunpack.c.l.b16 %v994
        %v1119 = vunpack.c.h.b16 %v994
        %v1120 = vunpack.c.l.b16 %v995
        %v1121 = vunpack.c.h.b16 %v995
        %v1122 = vunpack.c.l.b16 %v996
        %v1123 = vunpack.c.h.b16 %v996
        %v1124 = vunpack.c.l.b16 %v997
        %v1125 = vunpack.c.h.b16 %v997
        %v1126 = vunpack.c.l.b16 %v998
        %v1127 = vunpack.c.h.b16 %v998
        %v1128 = vunpack.c.l.b16 %v999
        %v1129 = vunpack.c.h.b16 %v999
        %v1130 = vunpack.c.l.b16 %v1000
        %v1131 = vunpack.c.h.b16 %v1000
        %v1132 = vunpack.c.l.b16 %v1001
        %v1133 = vunpack.c.h.b16 %v1001
        %v1134 = vunpack.c.l.b16 %v1002
        %v1135 = vunpack.c.h.b16 %v1002
        %v1136 = vunpack.c.l.b16 %v1003
        %v1137 = vunpack.c.h.b16 %v1003
        %v1138 = vunpack.c.l.b16 %v1004
        %v1139 = vunpack.c.h.b16 %v1004
        %v1140 = vunpack.c.l.b16 %v1005
        %v1141 = vunpack.c.h.b16 %v1005
        %v1142 = vunpack.c.l.b16 %v1006
        %v1143 = vunpack.c.h.b16 %v1006
        %v1144 = vunpack.c.l.b16 %v1007
        %v1145 = vunpack.c.h.b16 %v1007
        %v1146 = vunpack.c.l.b16 %v1008
        %v1147 = vunpack.c.h.b16 %v1008
        %v1148 = vunpack.c.l.b16 %v1009
        %v1149 = vunpack.c.h.b16 %v1009
        %v1150 = vunpack.c.l.b16 %v1010
        %v1151 = vunpack.c.h.b16 %v1010
        %v1152 = vunpack.c.l.b16 %v1011
        %v1153 = vunpack.c.h.b16 %v1011
        %v1154 = vunpack.c.l.b16 %v1012
        %v1155 = vunpack.c.h.b16 %v1012
        %v1156 = vunpack.c.l.b16 %v1013
        %v1157 = vunpack.c.h.b16 %v1013
        %v1158 = vunpack.c.l.b16 %v1014
        %v1159 = vunpack.c.h.b16 %v1014
        %v1160 = vunpack.c.l.b16 %v1015
        %v1161 = vunpack.c.h.b16 %v1015
        %v1162 = vunpack.c.l.b16 %v1016
        %v1163 = vunpack.c.h.b16 %v1016
        %v1164 = vunpack.c.l.b16 %v1017
        %v1165 = vunpack.c.h.b16 %v1017
        %v1166 = vunpack.c.l.b16 %v1018
        %v1167 = vunpack.c.h.b16 %v1018
        %v1168 = vunpack.c.l.b16 %v1019
        %v1169 = vunpack.c.h.b16 %v1019
        %v1170 = vunpack.c.l.b16 %v1020
        %v1171 = vunpack.c.h.b16 %v1020
        %v1172 = vunpack.c.l.b16 %v1021
        %v1173 = vunpack.c.h.b16 %v1021
        %v1174 = vpack.c.b16 %v1114, %v1110
        %v1175 = vpack.c.b16 %v1115, %v1111
        %v1176 = vpack.c.b16 %v1116, %v1112
        %v1177 = vpack.c.b16 %v1117, %v1113
        %v1178 = vpack.c.b16 %v1122, %v1118
        %v1179 = vpack.c.b16 %v1123, %v1119
        %v1180 = vpack.c.b16 %v1124, %v1120
        %v1181 = vpack.c.b16 %v1125, %v1121
        %v1182 = vpack.c.b16 %v1130, %v1126
        %v1183 = vpack.c.b16 %v1131, %v1127
        %v1184 = vpack.c.b16 %v1132, %v1128
        %v1185 = vpack.c.b16 %v1133, %v1129
        %v1186 = vpack.c.b16 %v1138, %v1134
        %v1187 = vpack.c.b16 %v1139, %v1135
        %v1188 = vpack.c.b16 %v1140, %v1136
        %v1189 = vpack.c.b16 %v1141, %v1137
        %v1190 = vpack.c.b16 %v1146, %v1142
        %v1191 = vpack.c.b16 %v1147, %v1143
        %v1192 = vpack.c.b16 %v1148, %v1144
        %v1193 = vpack.c.b16 %v1149, %v1145
        %v1194 = vpack.c.b16 %v1154, %v1150
        %v1195 = vpack.c.b16 %v1155, %v1151
        %v1196 = vpack.c.b16 %v1156, %v1152
        %v1197 = vpack.c.b16 %v1157, %v1153
        %v1198 = vpack.c.b16 %v1162, %v1158
        %v1199 = vpack.c.b16 %v1163, %v1159
        %v1200 = vpack.c.b16 %v1164, %v1160
        %v1201 = vpack.c.b16 %v1165, %v1161
        %v1202 = vpack.c.b16 %v1170, %v1166
        %v1203 = vpack.c.b16 %v1171, %v1167
        %v1204 = vpack.c.b16 %v1172, %v1168
        %v1205 = vpack.c.b16 %v1173, %v1169
        %vm1230 = vcmask 523264
        %v1232 = vsel %vm1230, %v1177, 0
        %v1235 = vsel %vm1230, %v1181, 0
        %v1238 = vsel %vm1230, %v1185, 0
        %v1241 = vsel %vm1230, %v1189, 0
        %v1244 = vsel %vm1230, %v1193, 0
        %v1247 = vsel %vm1230, %v1197, 0
        %v1250 = vsel %vm1230, %v1201, 0
        %v1253 = vsel %vm1230, %v1205, 0
        %1255 = vmatprep.subr.bf16.mxu0 %v1023
        %1256 = vmatpush1.bf16.msra.mxu0 %v1022
        %1257 = vmatprep.subr.bf16.mxu0 %v1025
        %1258 = vmatpush1.bf16.msra.mxu0 %v1024
        %1259 = vmatprep.subr.bf16.mxu0 %v1027
        %1260 = vmatpush1.bf16.msra.mxu0 %v1026
        %1261 = vmatprep.subr.bf16.mxu0 %v1029
        %1262 = vmatpush1.bf16.msra.mxu0 %v1028
        %1263 = vmatprep.subr.bf16.mxu0 %v1031
        %1264 = vmatpush1.bf16.msra.mxu0 %v1030
        %1265 = vmatprep.subr.bf16.mxu0 %v1033
        %1266 = vmatpush1.bf16.msra.mxu0 %v1032
        %1267 = vmatprep.subr.bf16.mxu0 %v1035
        %1268 = vmatpush1.bf16.msra.mxu0 %v1034
        %1269 = vmatprep.subr.bf16.mxu0 %v1037
        %1270 = vmatpush1.bf16.msra.mxu0 %v1036
        %1271 = vmatprep.subr.bf16.mxu0 %v1039
        %1272 = vmatpush1.bf16.msra.mxu0 %v1038
        %1273 = vmatprep.subr.bf16.mxu0 %v1041
        %1274 = vmatpush1.bf16.msra.mxu0 %v1040
        %1275 = vmatprep.subr.bf16.mxu0 %v1043
        %1276 = vmatpush1.bf16.msra.mxu0 %v1042
        %1277 = vmatprep.subr.bf16.mxu0 %v1045
        %1278 = vmatpush1.bf16.msra.mxu0 %v1044
        %1279 = vmatprep.subr.bf16.mxu0 %v1047
        %1280 = vmatpush1.bf16.msra.mxu0 %v1046
        %1281 = vmatprep.subr.bf16.mxu0 %v1049
        %1282 = vmatpush1.bf16.msra.mxu0 %v1048
        %1283 = vmatprep.subr.bf16.mxu0 %v1051
        %1284 = vmatpush1.bf16.msra.mxu0 %v1050
        %1285 = vmatprep.subr.bf16.mxu0 %v1053
        %1286 = vmatpush1.bf16.msra.mxu0 %v1052
        %1287 = vmatprep.mubr.bf16.mxu0 %v1175
        %1288 = vmatmul.mubr.bf16.gmra.mrb[0].mxu0 %v1174
        %v1289 = vpop.f32.mrb[0].mxu0
        %v1290 = vadd.f32 0.0, %v1289
        %v1291 = vpop.f32.mrb[0].mxu0
        %v1292 = vadd.f32 0.0, %v1291
        %v1293 = vpop.f32.mrb[0].mxu0
        %v1294 = vadd.f32 0.0, %v1293
        %v1295 = vpop.f32.mrb[0].mxu0
        %v1296 = vadd.f32 0.0, %v1295
        %1297 = vmatprep.mubr.bf16.mxu0 %v1179
        %1298 = vmatmul.mubr.bf16.gmra.mrb[0].mxu0 %v1178
        %v1299 = vpop.f32.mrb[0].mxu0
        %v1300 = vadd.f32 0.0, %v1299
        %v1301 = vpop.f32.mrb[0].mxu0
        %v1302 = vadd.f32 0.0, %v1301
        %v1303 = vpop.f32.mrb[0].mxu0
        %v1304 = vadd.f32 0.0, %v1303
        %v1305 = vpop.f32.mrb[0].mxu0
        %v1306 = vadd.f32 0.0, %v1305
        %1307 = vmatprep.mubr.bf16.mxu0 %v1183
        %1308 = vmatmul.mubr.bf16.gmra.mrb[0].mxu0 %v1182
        %v1309 = vpop.f32.mrb[0].mxu0
        %v1310 = vadd.f32 0.0, %v1309
        %v1311 = vpop.f32.mrb[0].mxu0
        %v1312 = vadd.f32 0.0, %v1311
        %v1313 = vpop.f32.mrb[0].mxu0
        %v1314 = vadd.f32 0.0, %v1313
        %v1315 = vpop.f32.mrb[0].mxu0
        %v1316 = vadd.f32 0.0, %v1315
        %1317 = vmatprep.mubr.bf16.mxu0 %v1187
        %1318 = vmatmul.mubr.bf16.gmra.mrb[0].mxu0 %v1186
        %v1319 = vpop.f32.mrb[0].mxu0
        %v1320 = vadd.f32 0.0, %v1319
        %v1321 = vpop.f32.mrb[0].mxu0
        %v1322 = vadd.f32 0.0, %v1321
        %v1323 = vpop.f32.mrb[0].mxu0
        %v1324 = vadd.f32 0.0, %v1323
        %v1325 = vpop.f32.mrb[0].mxu0
        %v1326 = vadd.f32 0.0, %v1325
        %1327 = vmatprep.mubr.bf16.mxu0 %v1191
        %1328 = vmatmul.mubr.bf16.gmra.mrb[0].mxu0 %v1190
        %v1329 = vpop.f32.mrb[0].mxu0
        %v1330 = vadd.f32 0.0, %v1329
        %v1331 = vpop.f32.mrb[0].mxu0
        %v1332 = vadd.f32 0.0, %v1331
        %v1333 = vpop.f32.mrb[0].mxu0
        %v1334 = vadd.f32 0.0, %v1333
        %v1335 = vpop.f32.mrb[0].mxu0
        %v1336 = vadd.f32 0.0, %v1335
        %1337 = vmatprep.mubr.bf16.mxu0 %v1195
        %1338 = vmatmul.mubr.bf16.gmra.mrb[0].mxu0 %v1194
        %v1339 = vpop.f32.mrb[0].mxu0
        %v1340 = vadd.f32 0.0, %v1339
        %v1341 = vpop.f32.mrb[0].mxu0
        %v1342 = vadd.f32 0.0, %v1341
        %v1343 = vpop.f32.mrb[0].mxu0
        %v1344 = vadd.f32 0.0, %v1343
        %v1345 = vpop.f32.mrb[0].mxu0
        %v1346 = vadd.f32 0.0, %v1345
        %1347 = vmatprep.mubr.bf16.mxu0 %v1199
        %1348 = vmatmul.mubr.bf16.gmra.mrb[0].mxu0 %v1198
        %v1349 = vpop.f32.mrb[0].mxu0
        %v1350 = vadd.f32 0.0, %v1349
        %v1351 = vpop.f32.mrb[0].mxu0
        %v1352 = vadd.f32 0.0, %v1351
        %v1353 = vpop.f32.mrb[0].mxu0
        %v1354 = vadd.f32 0.0, %v1353
        %v1355 = vpop.f32.mrb[0].mxu0
        %v1356 = vadd.f32 0.0, %v1355
        %1357 = vmatprep.mubr.bf16.mxu0 %v1203
        %1358 = vmatmul.mubr.bf16.gmra.mrb[0].mxu0 %v1202
        %v1359 = vpop.f32.mrb[0].mxu0
        %v1360 = vadd.f32 0.0, %v1359
        %v1361 = vpop.f32.mrb[0].mxu0
        %v1362 = vadd.f32 0.0, %v1361
        %v1363 = vpop.f32.mrb[0].mxu0
        %v1364 = vadd.f32 0.0, %v1363
        %v1365 = vpop.f32.mrb[0].mxu0
        %v1366 = vadd.f32 0.0, %v1365
        %1367 = vdwg.mxu0
        %1368 = vmatprep.subr.bf16.mxu0 %v1055
        %1369 = vmatpush1.bf16.msra.mxu0 %v1054
        %1370 = vmatprep.subr.bf16.mxu0 %v1057
        %1371 = vmatpush1.bf16.msra.mxu0 %v1056
        %1372 = vmatprep.subr.bf16.mxu0 %v1059
        %1373 = vmatpush1.bf16.msra.mxu0 %v1058
        %1374 = vmatprep.subr.bf16.mxu0 %v1061
        %1375 = vmatpush1.bf16.msra.mxu0 %v1060
        %1376 = vmatprep.subr.bf16.mxu0 %v1063
        %1377 = vmatpush1.bf16.msra.mxu0 %v1062
        %1378 = vmatprep.subr.bf16.mxu0 %v1065
        %1379 = vmatpush1.bf16.msra.mxu0 %v1064
        %1380 = vmatprep.subr.bf16.mxu0 %v1067
        %1381 = vmatpush1.bf16.msra.mxu0 %v1066
        %1382 = vmatprep.subr.bf16.mxu0 %v1069
        %1383 = vmatpush1.bf16.msra.mxu0 %v1068
        %1384 = vmatprep.subr.bf16.mxu0 %v1071
        %1385 = vmatpush1.bf16.msra.mxu0 %v1070
        %1386 = vmatprep.subr.bf16.mxu0 %v1073
        %1387 = vmatpush1.bf16.msra.mxu0 %v1072
        %1388 = vmatprep.subr.bf16.mxu0 %v1075
        %1389 = vmatpush1.bf16.msra.mxu0 %v1074
        %1390 = vmatprep.subr.bf16.mxu0 %v1077
        %1391 = vmatpush1.bf16.msra.mxu0 %v1076
        %1392 = vmatprep.subr.bf16.mxu0 0
        %1393 = vmatpush1.bf16.msra.mxu0 0
        %1394 = vmatprep.subr.bf16.mxu0 0
        %1395 = vmatpush1.bf16.msra.mxu0 0
        %1396 = vmatprep.subr.bf16.mxu0 0
        %1397 = vmatpush1.bf16.msra.mxu0 0
        %1398 = vmatprep.subr.bf16.mxu0 0
        %1399 = vmatpush1.bf16.msra.mxu0 0
        %1400 = vmatprep.mubr.bf16.mxu0 %v1232
        %1401 = vmatmul.mubr.bf16.gmra.mrb[0].mxu0 %v1176
        %v1402 = vpop.f32.mrb[0].mxu0
        %v1403 = vadd.f32 %v1290, %v1402
        %v1404 = vpop.f32.mrb[0].mxu0
        %v1405 = vadd.f32 %v1292, %v1404
        %v1406 = vpop.f32.mrb[0].mxu0
        %v1407 = vadd.f32 %v1294, %v1406
        %v1408 = vpop.f32.mrb[0].mxu0
        %v1409 = vadd.f32 %v1296, %v1408
        %1410 = vmatprep.mubr.bf16.mxu0 %v1235
        %1411 = vmatmul.mubr.bf16.gmra.mrb[0].mxu0 %v1180
        %v1412 = vpop.f32.mrb[0].mxu0
        %v1413 = vadd.f32 %v1300, %v1412
        %v1414 = vpop.f32.mrb[0].mxu0
        %v1415 = vadd.f32 %v1302, %v1414
        %v1416 = vpop.f32.mrb[0].mxu0
        %v1417 = vadd.f32 %v1304, %v1416
        %v1418 = vpop.f32.mrb[0].mxu0
        %v1419 = vadd.f32 %v1306, %v1418
        %1420 = vmatprep.mubr.bf16.mxu0 %v1238
        %1421 = vmatmul.mubr.bf16.gmra.mrb[0].mxu0 %v1184
        %v1422 = vpop.f32.mrb[0].mxu0
        %v1423 = vadd.f32 %v1310, %v1422
        %v1424 = vpop.f32.mrb[0].mxu0
        %v1425 = vadd.f32 %v1312, %v1424
        %v1426 = vpop.f32.mrb[0].mxu0
        %v1427 = vadd.f32 %v1314, %v1426
        %v1428 = vpop.f32.mrb[0].mxu0
        %v1429 = vadd.f32 %v1316, %v1428
        %1430 = vmatprep.mubr.bf16.mxu0 %v1241
        %1431 = vmatmul.mubr.bf16.gmra.mrb[0].mxu0 %v1188
        %v1432 = vpop.f32.mrb[0].mxu0
        %v1433 = vadd.f32 %v1320, %v1432
        %v1434 = vpop.f32.mrb[0].mxu0
        %v1435 = vadd.f32 %v1322, %v1434
        %v1436 = vpop.f32.mrb[0].mxu0
        %v1437 = vadd.f32 %v1324, %v1436
        %v1438 = vpop.f32.mrb[0].mxu0
        %v1439 = vadd.f32 %v1326, %v1438
        %1440 = vmatprep.mubr.bf16.mxu0 %v1244
        %1441 = vmatmul.mubr.bf16.gmra.mrb[0].mxu0 %v1192
        %v1442 = vpop.f32.mrb[0].mxu0
        %v1443 = vadd.f32 %v1330, %v1442
        %v1444 = vpop.f32.mrb[0].mxu0
        %v1445 = vadd.f32 %v1332, %v1444
        %v1446 = vpop.f32.mrb[0].mxu0
        %v1447 = vadd.f32 %v1334, %v1446
        %v1448 = vpop.f32.mrb[0].mxu0
        %v1449 = vadd.f32 %v1336, %v1448
        %1450 = vmatprep.mubr.bf16.mxu0 %v1247
        %1451 = vmatmul.mubr.bf16.gmra.mrb[0].mxu0 %v1196
        %v1452 = vpop.f32.mrb[0].mxu0
        %v1453 = vadd.f32 %v1340, %v1452
        %v1454 = vpop.f32.mrb[0].mxu0
        %v1455 = vadd.f32 %v1342, %v1454
        %v1456 = vpop.f32.mrb[0].mxu0
        %v1457 = vadd.f32 %v1344, %v1456
        %v1458 = vpop.f32.mrb[0].mxu0
        %v1459 = vadd.f32 %v1346, %v1458
        %1460 = vmatprep.mubr.bf16.mxu0 %v1250
        %1461 = vmatmul.mubr.bf16.gmra.mrb[0].mxu0 %v1200
        %v1462 = vpop.f32.mrb[0].mxu0
        %v1463 = vadd.f32 %v1350, %v1462
        %v1464 = vpop.f32.mrb[0].mxu0
        %v1465 = vadd.f32 %v1352, %v1464
        %v1466 = vpop.f32.mrb[0].mxu0
        %v1467 = vadd.f32 %v1354, %v1466
        %v1468 = vpop.f32.mrb[0].mxu0
        %v1469 = vadd.f32 %v1356, %v1468
        %1470 = vmatprep.mubr.bf16.mxu0 %v1253
        %1471 = vmatmul.mubr.bf16.gmra.mrb[0].mxu0 %v1204
        %v1472 = vpop.f32.mrb[0].mxu0
        %v1473 = vadd.f32 %v1360, %v1472
        %v1474 = vpop.f32.mrb[0].mxu0
        %v1475 = vadd.f32 %v1362, %v1474
        %v1476 = vpop.f32.mrb[0].mxu0
        %v1477 = vadd.f32 %v1364, %v1476
        %v1478 = vpop.f32.mrb[0].mxu0
        %v1479 = vadd.f32 %v1366, %v1478
        %1480 = vdwg.mxu0
        %v1481 = vxor.u32 %v1403, 2147483648
        %v1482 = vxor.u32 %v1405, 2147483648
        %v1483 = vxor.u32 %v1407, 2147483648
        %v1484 = vxor.u32 %v1409, 2147483648
        %v1485 = vxor.u32 %v1413, 2147483648
        %v1486 = vxor.u32 %v1415, 2147483648
        %v1487 = vxor.u32 %v1417, 2147483648
        %v1488 = vxor.u32 %v1419, 2147483648
        %v1489 = vmul.f32 %v1481, 1.442695
        %v1490 = vpow.pop %v1489
        %v1491 = vmul.f32 %v1482, 1.442695
        %v1492 = vpow.pop %v1491
        %v1493 = vmul.f32 %v1483, 1.442695
        %v1494 = vpow.pop %v1493
        %v1495 = vmul.f32 %v1484, 1.442695
        %v1496 = vpow.pop %v1495
        %v1497 = vmul.f32 %v1485, 1.442695
        %v1498 = vpow.pop %v1497
        %v1499 = vmul.f32 %v1486, 1.442695
        %v1500 = vpow.pop %v1499
        %v1501 = vmul.f32 %v1487, 1.442695
        %v1502 = vpow.pop %v1501
        %v1503 = vmul.f32 %v1488, 1.442695
        %v1504 = vpow.pop %v1503
        %v1505 = vadd.f32 %v1490, 1.0
        %v1506 = vadd.f32 %v1492, 1.0
        %v1507 = vadd.f32 %v1494, 1.0
        %v1508 = vadd.f32 %v1496, 1.0
        %v1509 = vadd.f32 %v1498, 1.0
        %v1510 = vadd.f32 %v1500, 1.0
        %v1511 = vadd.f32 %v1502, 1.0
        %v1512 = vadd.f32 %v1504, 1.0
        %v1513 = vrcp.pop %v1505
        %v1514 = vmul.f32 1.0, %v1513
        %v1515 = vrcp.pop %v1506
        %v1516 = vmul.f32 1.0, %v1515
        %v1517 = vrcp.pop %v1507
        %v1518 = vmul.f32 1.0, %v1517
        %v1519 = vrcp.pop %v1508
        %v1520 = vmul.f32 1.0, %v1519
        %v1521 = vrcp.pop %v1509
        %v1522 = vmul.f32 1.0, %v1521
        %v1523 = vrcp.pop %v1510
        %v1524 = vmul.f32 1.0, %v1523
        %v1525 = vrcp.pop %v1511
        %v1526 = vmul.f32 1.0, %v1525
        %v1527 = vrcp.pop %v1512
        %v1528 = vmul.f32 1.0, %v1527
        %v1529 = vxor.u32 %v1423, 2147483648
        %v1530 = vxor.u32 %v1425, 2147483648
        %v1531 = vxor.u32 %v1427, 2147483648
        %v1532 = vxor.u32 %v1429, 2147483648
        %v1533 = vxor.u32 %v1433, 2147483648
        %v1534 = vxor.u32 %v1435, 2147483648
        %v1535 = vxor.u32 %v1437, 2147483648
        %v1536 = vxor.u32 %v1439, 2147483648
        %v1537 = vmul.f32 %v1529, 1.442695
        %v1538 = vpow.pop %v1537
        %v1539 = vmul.f32 %v1530, 1.442695
        %v1540 = vpow.pop %v1539
        %v1541 = vmul.f32 %v1531, 1.442695
        %v1542 = vpow.pop %v1541
        %v1543 = vmul.f32 %v1532, 1.442695
        %v1544 = vpow.pop %v1543
        %v1545 = vmul.f32 %v1533, 1.442695
        %v1546 = vpow.pop %v1545
        %v1547 = vmul.f32 %v1534, 1.442695
        %v1548 = vpow.pop %v1547
        %v1549 = vmul.f32 %v1535, 1.442695
        %v1550 = vpow.pop %v1549
        %v1551 = vmul.f32 %v1536, 1.442695
        %v1552 = vpow.pop %v1551
        %v1553 = vadd.f32 %v1538, 1.0
        %v1554 = vadd.f32 %v1540, 1.0
        %v1555 = vadd.f32 %v1542, 1.0
        %v1556 = vadd.f32 %v1544, 1.0
        %v1557 = vadd.f32 %v1546, 1.0
        %v1558 = vadd.f32 %v1548, 1.0
        %v1559 = vadd.f32 %v1550, 1.0
        %v1560 = vadd.f32 %v1552, 1.0
        %v1561 = vrcp.pop %v1553
        %v1562 = vmul.f32 1.0, %v1561
        %v1563 = vrcp.pop %v1554
        %v1564 = vmul.f32 1.0, %v1563
        %v1565 = vrcp.pop %v1555
        %v1566 = vmul.f32 1.0, %v1565
        %v1567 = vrcp.pop %v1556
        %v1568 = vmul.f32 1.0, %v1567
        %v1569 = vrcp.pop %v1557
        %v1570 = vmul.f32 1.0, %v1569
        %v1571 = vrcp.pop %v1558
        %v1572 = vmul.f32 1.0, %v1571
        %v1573 = vrcp.pop %v1559
        %v1574 = vmul.f32 1.0, %v1573
        %v1575 = vrcp.pop %v1560
        %v1576 = vmul.f32 1.0, %v1575
        %v1577 = vxor.u32 %v1443, 2147483648
        %v1578 = vxor.u32 %v1445, 2147483648
        %v1579 = vxor.u32 %v1447, 2147483648
        %v1580 = vxor.u32 %v1449, 2147483648
        %v1581 = vxor.u32 %v1453, 2147483648
        %v1582 = vxor.u32 %v1455, 2147483648
        %v1583 = vxor.u32 %v1457, 2147483648
        %v1584 = vxor.u32 %v1459, 2147483648
        %v1585 = vmul.f32 %v1577, 1.442695
        %v1586 = vpow.pop %v1585
        %v1587 = vmul.f32 %v1578, 1.442695
        %v1588 = vpow.pop %v1587
        %v1589 = vmul.f32 %v1579, 1.442695
        %v1590 = vpow.pop %v1589
        %v1591 = vmul.f32 %v1580, 1.442695
        %v1592 = vpow.pop %v1591
        %v1593 = vmul.f32 %v1581, 1.442695
        %v1594 = vpow.pop %v1593
        %v1595 = vmul.f32 %v1582, 1.442695
        %v1596 = vpow.pop %v1595
        %v1597 = vmul.f32 %v1583, 1.442695
        %v1598 = vpow.pop %v1597
        %v1599 = vmul.f32 %v1584, 1.442695
        %v1600 = vpow.pop %v1599
        %v1601 = vadd.f32 %v1586, 1.0
        %v1602 = vadd.f32 %v1588, 1.0
        %v1603 = vadd.f32 %v1590, 1.0
        %v1604 = vadd.f32 %v1592, 1.0
        %v1605 = vadd.f32 %v1594, 1.0
        %v1606 = vadd.f32 %v1596, 1.0
        %v1607 = vadd.f32 %v1598, 1.0
        %v1608 = vadd.f32 %v1600, 1.0
        %v1609 = vrcp.pop %v1601
        %v1610 = vmul.f32 1.0, %v1609
        %v1611 = vrcp.pop %v1602
        %v1612 = vmul.f32 1.0, %v1611
        %v1613 = vrcp.pop %v1603
        %v1614 = vmul.f32 1.0, %v1613
        %v1615 = vrcp.pop %v1604
        %v1616 = vmul.f32 1.0, %v1615
        %v1617 = vrcp.pop %v1605
        %v1618 = vmul.f32 1.0, %v1617
        %v1619 = vrcp.pop %v1606
        %v1620 = vmul.f32 1.0, %v1619
        %v1621 = vrcp.pop %v1607
        %v1622 = vmul.f32 1.0, %v1621
        %v1623 = vrcp.pop %v1608
        %v1624 = vmul.f32 1.0, %v1623
        %v1625 = vtanh.pop %v1463
        %v1626 = vtanh.pop %v1465
        %v1627 = vtanh.pop %v1467
        %v1628 = vtanh.pop %v1469
        %v1629 = vtanh.pop %v1473
        %v1630 = vtanh.pop %v1475
        %v1631 = vtanh.pop %v1477
        %v1632 = vtanh.pop %v1479
        %v1633 = vld [vmem:[%s242] sm:$0xff]
        %v1634 = vld [vmem:[%s242 + $0x8] sm:$0xff]
        %v1635 = vld [vmem:[%s242 + $0x10] sm:$0xff]
        %v1636 = vld [vmem:[%s242 + $0x18] sm:$0xff]
        %v1637 = vld [vmem:[%s242 + $0x20] sm:$0xff]
        %v1638 = vld [vmem:[%s242 + $0x28] sm:$0xff]
        %v1639 = vld [vmem:[%s242 + $0x30] sm:$0xff]
        %v1640 = vld [vmem:[%s242 + $0x38] sm:$0xff]
        %v1641 = vmul.f32 %v1562, %v1633
        %v1642 = vmul.f32 %v1564, %v1634
        %v1643 = vmul.f32 %v1566, %v1635
        %v1644 = vmul.f32 %v1568, %v1636
        %v1645 = vmul.f32 %v1570, %v1637
        %v1646 = vmul.f32 %v1572, %v1638
        %v1647 = vmul.f32 %v1574, %v1639
        %v1648 = vmul.f32 %v1576, %v1640
        %v1649 = vmul.f32 %v1514, %v1625
        %v1650 = vmul.f32 %v1516, %v1626
        %v1651 = vmul.f32 %v1518, %v1627
        %v1652 = vmul.f32 %v1520, %v1628
        %v1653 = vmul.f32 %v1522, %v1629
        %v1654 = vmul.f32 %v1524, %v1630
        %v1655 = vmul.f32 %v1526, %v1631
        %v1656 = vmul.f32 %v1528, %v1632
        %v1657 = vadd.f32 %v1641, %v1649
        %v1658 = vadd.f32 %v1642, %v1650
        %v1659 = vadd.f32 %v1643, %v1651
        %v1660 = vadd.f32 %v1644, %v1652
        %v1661 = vadd.f32 %v1645, %v1653
        %v1662 = vadd.f32 %v1646, %v1654
        %v1663 = vadd.f32 %v1647, %v1655
        %v1664 = vadd.f32 %v1648, %v1656
        %v1665 = vtanh.pop %v1657
        %v1666 = vtanh.pop %v1658
        %v1667 = vtanh.pop %v1659
        %v1668 = vtanh.pop %v1660
        %v1669 = vtanh.pop %v1661
        %v1670 = vtanh.pop %v1662
        %v1671 = vtanh.pop %v1663
        %v1672 = vtanh.pop %v1664
        %v1673 = vmul.f32 %v1610, %v1665
        %v1674 = vmul.f32 %v1612, %v1666
        %v1675 = vmul.f32 %v1614, %v1667
        %v1676 = vmul.f32 %v1616, %v1668
        %v1677 = vmul.f32 %v1618, %v1669
        %v1678 = vmul.f32 %v1620, %v1670
        %v1679 = vmul.f32 %v1622, %v1671
        %v1680 = vmul.f32 %v1624, %v1672
        %1681 = vst [vmem:[%s283] sm:$0xff] %v1657
        %1682 = vst [vmem:[%s283 + $0x8] sm:$0xff] %v1658
        %1683 = vst [vmem:[%s283 + $0x10] sm:$0xff] %v1659
        %1684 = vst [vmem:[%s283 + $0x18] sm:$0xff] %v1660
        %1685 = vst [vmem:[%s283 + $0x20] sm:$0xff] %v1661
        %1686 = vst [vmem:[%s283 + $0x28] sm:$0xff] %v1662
        %1687 = vst [vmem:[%s283 + $0x30] sm:$0xff] %v1663
        %1688 = vst [vmem:[%s283 + $0x38] sm:$0xff] %v1664
        %1689 = vst [vmem:[%s276] sm:$0xff] %v1673
        %1690 = vst [vmem:[%s276 + $0x8] sm:$0xff] %v1674
        %1691 = vst [vmem:[%s276 + $0x10] sm:$0xff] %v1675
        %1692 = vst [vmem:[%s276 + $0x18] sm:$0xff] %v1676
        %1693 = vst [vmem:[%s276 + $0x20] sm:$0xff] %v1677
        %1694 = vst [vmem:[%s276 + $0x28] sm:$0xff] %v1678
        %1695 = vst [vmem:[%s276 + $0x30] sm:$0xff] %v1679
        %1696 = vst [vmem:[%s276 + $0x38] sm:$0xff] %v1680
        %s1697 = sand.u32 %s133, 1
        %s1698 = scalar_lea.sflag [#allocation6], %s1697
        %s1699 = sand.u32 %s133, 1
        %s1700 = smul.addr %s1699, 64
        %s1701 = scalar_lea.vmem [#allocation7], %s1700
        %s1702 = sand.u32 %s159, 1
        %s1703 = scalar_lea.sflag [#allocation9], %s1702
        %s1704 = sand.u32 %s159, 1
        %s1705 = smul.addr %s1704, 64
        %s1706 = scalar_lea.vmem [#allocation8], %s1705
        // Predicated region
        $region41: #{tpu_custom_call.1} parent=35 // pred_check
          %p1707 = pneg %p143
        $region42: #{tpu_custom_call.1} parent=35 // pred_check_branch
          %1709 = sbr.rel (%p1707) target = $region44
        $region43: #{tpu_custom_call.1} parent=35 // pred_region
          %s1711 = ssub.s32 1024, 1024
          %1712 = vsyncadd %s1698, %s1711
          %s1713 = smul.addr %s26, 8
          %s1714 = smul.addr %s1713, 128
          %s1715 = scalar_lea.hbm %s4, %s1714
          %s1716 = sshll.u32 %s1701, 4
          %s1717 = int_to_ptr.vmem [resolvable:$true] %s1716
          %1722 = dma.vmem_to_hbm [thread:$0]  %s1717, 1024, %s1715, %s1698, 256, 256, 16
        $region44: #{tpu_custom_call.1} parent=35 // pred_fallthru
          _
        // Predicated region
        $region45: #{tpu_custom_call.1} parent=35 // pred_check
          %p1723 = pneg %p169
        $region46: #{tpu_custom_call.1} parent=35 // pred_check_branch
          %1725 = sbr.rel (%p1723) target = $region48
        $region47: #{tpu_custom_call.1} parent=35 // pred_region
          %s1727 = ssub.s32 1024, 1024
          %1728 = vsyncadd %s1703, %s1727
          %s1729 = smul.addr %s26, 8
          %s1730 = smul.addr %s1729, 128
          %s1731 = scalar_lea.hbm %s5, %s1730
          %s1732 = sshll.u32 %s1706, 4
          %s1733 = int_to_ptr.vmem [resolvable:$true] %s1732
          %1738 = dma.vmem_to_hbm [thread:$0]  %s1733, 1024, %s1731, %s1703, 256, 256, 16
        $region48: #{tpu_custom_call.1} parent=35 // pred_fallthru
          _
      $region36: #{tpu_custom_call.1} parent=5 // pred_fallthru
        _
      %p1739 = scmp.le.s32.totalorder 2, %s21
      // Predicated region
      $region49: #{tpu_custom_call.1} parent=5 // pred_check
        %p1740 = pneg %p1739
      $region50: #{tpu_custom_call.1} parent=5 // pred_check_branch
        %1742 = sbr.rel (%p1740) target = $region52
      $region51: #{tpu_custom_call.1} parent=5 // pred_region
        %s1743 = ssub.s32 %s21, 2
        // Predicated region
        $region53: #{tpu_custom_call.1} parent=51 // pred_check
          %p1744 = pneg %p149
        $region54: #{tpu_custom_call.1} parent=51 // pred_check_branch
          %1746 = sbr.rel (%p1744) target = $region56
        $region55: #{tpu_custom_call.1} parent=51 // pred_region
          %s1747 = sand.u32 %s134, 1
          %s1748 = scalar_lea.sflag [#allocation6], %s1747
          %s1749 = sand.u32 %s134, 1
          %s1750 = smul.addr %s1749, 64
          %s1751 = scalar_lea.vmem [#allocation7], %s1750
          %1752 = dma.done %s1748, 1024
        $region56: #{tpu_custom_call.1} parent=51 // pred_fallthru
          _
        // Predicated region
        $region57: #{tpu_custom_call.1} parent=51 // pred_check
          %p1753 = pneg %p175
        $region58: #{tpu_custom_call.1} parent=51 // pred_check_branch
          %1755 = sbr.rel (%p1753) target = $region60
        $region59: #{tpu_custom_call.1} parent=51 // pred_region
          %s1756 = sand.u32 %s160, 1
          %s1757 = scalar_lea.sflag [#allocation9], %s1756
          %s1758 = sand.u32 %s160, 1
          %s1759 = smul.addr %s1758, 64
          %s1760 = scalar_lea.vmem [#allocation8], %s1759
          %1761 = dma.done %s1757, 1024
        $region60: #{tpu_custom_call.1} parent=51 // pred_fallthru
          _
      $region52: #{tpu_custom_call.1} parent=5 // pred_fallthru
        _
    $region6: #{tpu_custom_call.1} parent=1 // loop_footer
      %s25 = sadd.s32 1, %s21
    $region7: #{tpu_custom_call.1} parent=1 // loop_footer_branch
      %20 = sbr.rel target = $region3
    $region8: #{tpu_custom_call.1} parent=1 // loop_exit
      _
    %1762 = vsyncpa [#allocation5], 1
    %s1763 = scalar_lea.sflag [#allocation5], 1
    %1764 = vsyncpa %s1763, 1
    %1765 = vsyncpa [#allocation6], 1
    %s1766 = scalar_lea.sflag [#allocation6], 1
    %1767 = vsyncpa %s1766, 1
    %1768 = vsyncpa [#allocation9], 1
    %s1769 = scalar_lea.sflag [#allocation9], 1
    %1770 = vsyncpa %s1769, 1

</llo_original>
